<compile_context>
chip_gen: v7x
topology: tpu7x:2x2x1
jax: 0.10.0
libtpu: 0.0.40
codegen_flags: <defaults>
</compile_context>

<pallas_src>
import math
import functools

import jax
import jax.numpy as jnp
from jax import lax
from jax.experimental import pallas as pl
from jax.experimental.pallas import tpu as pltpu


# ----------------------------- config ---------------------------------------
class GemmaConfig:
    hidden_size = 32
    num_attention_heads = 4
    num_key_value_heads = 2
    head_dim = 16
    max_position_embeddings = 2048
    rope_theta = 10000.0
    attention_dropout = 0.0
    attention_bias = False


# ----------------------------- Pallas kernel --------------------------------
def _fused_attn_kernel(x_ref, wf_ref, wo_ref, cos_ref, sin_ref, mask_ref,
                       o_ref, w_ref=None, *, num_heads, num_kv_heads,
                       head_dim, scale, mxu_dtype):
    """One program = one batch element. Everything stays in VMEM.

    Fused-weight / qkv column layout: [ q | k | v | rot_half(q) | rot_half(k) ].
    """
    S = x_ref.shape[1]
    D = head_dim
    n_rep = num_heads // num_kv_heads
    q_sz = num_heads * D
    kv_sz = num_kv_heads * D
    off_q, off_k, off_v = 0, q_sz, q_sz + kv_sz
    off_qr = q_sz + 2 * kv_sz
    off_kr = off_qr + q_sz

    x = x_ref[0].astype(mxu_dtype)                         # (S, H)
    wf = wf_ref[...].astype(mxu_dtype)                     # (H, N)
    # Fused QKV (+rotated) projection: one MXU matmul, f32 accumulation.
    qkv = jnp.dot(x, wf, preferred_element_type=jnp.float32)     # (S, N) f32

    # RoPE at SLAB granularity: cos/sin arrive pre-tiled to (S, nH*D); the
    # first nKV*D columns of the same tile serve K (tiling is D-periodic).
    cos_q = cos_ref[0]                                     # (S, nH*D) f32
    sin_q = sin_ref[0]
    q_e = (qkv[:, off_q:off_q + q_sz] * cos_q
           + qkv[:, off_qr:off_qr + q_sz] * sin_q)         # (S, nH*D)
    k_e = (qkv[:, off_k:off_k + kv_sz] * cos_q[:, :kv_sz]
           + qkv[:, off_kr:off_kr + kv_sz] * sin_q[:, :kv_sz])   # (S, nKV*D)
    v_all = qkv[:, off_v:off_v + kv_sz]                    # (S, nKV*D)

    mask = mask_ref[0, 0].astype(jnp.float32)              # (S, S)

    ctxs = []
    for h in range(num_heads):                             # statically unrolled
        g = h // n_rep                                     # repeat_kv (GQA)
        q_h = q_e[:, h * D:(h + 1) * D].astype(mxu_dtype)
        k_g = k_e[:, g * D:(g + 1) * D].astype(mxu_dtype)
        # q_h @ k_g^T without materializing a transpose.
        scores = lax.dot_general(q_h, k_g, (((1,), (1,)), ((), ())),
                                 preferred_element_type=jnp.float32)  # (S, S)
        scores = scores * scale + mask
        m = jnp.max(scores, axis=-1, keepdims=True)
        p = jnp.exp(scores - m)
        l = jnp.sum(p, axis=-1, keepdims=True)
        attn = p / l                                       # exact softmax (f32)
        if w_ref is not None:
            w_ref[0, h] = attn.astype(w_ref.dtype)
        v_g = v_all[:, g * D:(g + 1) * D].astype(mxu_dtype)
        # dropout p=0.0 -> identity.
        ctxs.append(jnp.dot(attn.astype(mxu_dtype), v_g,
                            preferred_element_type=jnp.float32))   # (S, D)

    # o_proj as ONE matmul with contraction depth nH*D (no serial acc chain).
    ctx_all = jnp.concatenate(ctxs, axis=-1)               # (S, nH*D)
    wo = wo_ref[...].astype(mxu_dtype)                     # (nH*D, H)
    out = jnp.dot(ctx_all.astype(mxu_dtype), wo,
                  preferred_element_type=jnp.float32)      # (S, H)
    o_ref[0] = out.astype(o_ref.dtype)


# ----------------------------- wrapper ---------------------------------------
def gemma_attention_fused(x, w_fused, wo_t, cos, sin, attention_mask, *,
                          num_heads, num_kv_heads, head_dim,
                          return_attn_weights=True, mxu_dtype=jnp.float32):
    """x: (B,S,H); w_fused: (H, 2*nH*D + 3*nKV*D); wo_t: (nH*D, H);
    cos/sin: (B,S,D) rotary tables; attention_mask: (1,1,S,S) or (B,1,S,S)."""
    B, S, H = x.shape
    N = w_fused.shape[1]
    q_sz = num_heads * head_dim

    # Pre-tile cos/sin to slab width so in-kernel RoPE is one wide mul-add.
    cos_big = jnp.tile(cos.astype(jnp.float32), (1, 1, num_heads))  # (B,S,nH*D)
    sin_big = jnp.tile(sin.astype(jnp.float32), (1, 1, num_heads))

    # Batch-shared mask -> one (1,1,S,S) block reused by every program.
    if attention_mask.shape[0] == 1:
        mask_map = lambda b: (0, 0, 0, 0)
    else:
        mask_map = lambda b: (b, 0, 0, 0)

    kernel = functools.partial(
        _fused_attn_kernel, num_heads=num_heads, num_kv_heads=num_kv_heads,
        head_dim=head_dim, scale=1.0 / math.sqrt(head_dim),
        mxu_dtype=mxu_dtype)

    in_specs = [
        pl.BlockSpec((1, S, H), lambda b: (b, 0, 0)),                 # x
        pl.BlockSpec((H, N), lambda b: (0, 0)),                       # fused W
        pl.BlockSpec((q_sz, H), lambda b: (0, 0)),                    # Wo^T
        pl.BlockSpec((1, S, q_sz), lambda b: (b, 0, 0)),              # cos slab
        pl.BlockSpec((1, S, q_sz), lambda b: (b, 0, 0)),              # sin slab
        pl.BlockSpec((1, 1, S, S), mask_map),                         # mask
    ]
    out_shape = [jax.ShapeDtypeStruct((B, S, H), x.dtype)]
    out_specs = [pl.BlockSpec((1, S, H), lambda b: (b, 0, 0))]
    if return_attn_weights:
        out_shape.append(jax.ShapeDtypeStruct((B, num_heads, S, S), x.dtype))
        out_specs.append(pl.BlockSpec((1, num_heads, S, S),
                                      lambda b: (b, 0, 0, 0)))

    # VMEM sizing: double-buffered blocks + in-kernel intermediates + headroom;
    # never below the 32 MiB scoped default.
    blk_bytes = 4 * (S * H + H * N + q_sz * H + 2 * S * q_sz + S * S + S * H
                     + (num_heads * S * S if return_attn_weights else 0))
    inter_bytes = 4 * (S * N + 3 * S * q_sz + 2 * num_heads * S * S)
    vmem_limit = int(min(100 << 20,
                         max(32 << 20, 2 * blk_bytes + inter_bytes + (4 << 20))))

    outs = pl.pallas_call(
        kernel,
        out_shape=tuple(out_shape),
        grid=(B,),
        in_specs=in_specs,
        out_specs=tuple(out_specs),
        compiler_params=pltpu.CompilerParams(
            dimension_semantics=("parallel",),
            vmem_limit_bytes=vmem_limit),
    )(x, w_fused, wo_t, cos_big, sin_big, attention_mask)

    if return_attn_weights:
        return outs[0], outs[1]
    return outs[0], None


# ----------------------------- module wrapper --------------------------------
class GemmaAttentionPallas:
    def __init__(self, config, key, mxu_dtype=jnp.float32):
        self.cfg = config
        self.mxu_dtype = mxu_dtype
        H = config.hidden_size
        nH = config.num_attention_heads
        nKV = config.num_key_value_heads
        D = config.head_dim
        half = D // 2
        k1, k2, k3, k4 = jax.random.split(key, 4)
        init_scale = 0.02
        # nn.Linear weight layout: (out_features, in_features)
        self.wq = jax.random.normal(k1, (nH * D, H), jnp.float32) * init_scale
        self.wk = jax.random.normal(k2, (nKV * D, H), jnp.float32) * init_scale
        self.wv = jax.random.normal(k3, (nKV * D, H), jnp.float32) * init_scale
        self.wo = jax.random.normal(k4, (H, nH * D), jnp.float32) * init_scale

        def rot_cols(w_t, n_heads):
            # rotate_half in the reference is cat(-x[..., :d/2], x[..., :d/2]);
            # it is linear, so fold it into the projection columns.
            w3 = w_t.reshape(H, n_heads, D)
            w3r = jnp.concatenate([-w3[..., :half], w3[..., :half]], axis=-1)
            return w3r.reshape(H, n_heads * D)

        wq_t, wk_t, wv_t = self.wq.T, self.wk.T, self.wv.T
        self.w_fused = jnp.concatenate(
            [wq_t, wk_t, wv_t, rot_cols(wq_t, nH), rot_cols(wk_t, nKV)],
            axis=1)                       # (H, 2*nH*D + 3*nKV*D) = (32, 224)
        self.wo_t = self.wo.T             # (nH*D, H)
        self.inv_freq = 1.0 / (
            config.rope_theta
            ** (jnp.arange(0, D, 2, dtype=jnp.float32) / D))

    def _rotary(self, position_ids, dtype):
        # position_ids: (B, S) -> cos, sin: (B, S, head_dim)
        pos = position_ids.astype(jnp.float32)                    # (B, S)
        freqs = pos[:, :, None] * self.inv_freq[None, None, :]    # (B, S, D/2)
        emb = jnp.concatenate([freqs, freqs], axis=-1)            # (B, S, D)
        return jnp.cos(emb).astype(dtype), jnp.sin(emb).astype(dtype)

    def __call__(self, hidden_states, attention_mask, position_ids):
        cfg = self.cfg
        cos, sin = self._rotary(position_ids, hidden_states.dtype)
        # TODO(synk): kv_cache update path not implemented (kv_cache=None only).
        out, attn_w = gemma_attention_fused(
            hidden_states, self.w_fused, self.wo_t, cos, sin, attention_mask,
            num_heads=cfg.num_attention_heads,
            num_kv_heads=cfg.num_key_value_heads,
            head_dim=cfg.head_dim,
            return_attn_weights=True,
            mxu_dtype=self.mxu_dtype)
        return out, attn_w


# ----------------------------- pure-JAX reference ----------------------------
def _reference_forward(x, wq, wk, wv, wo, cos, sin, mask, nH, nKV, D):
    B, S, H = x.shape
    q = (x @ wq.T).reshape(B, S, nH, D).transpose(0, 2, 1, 3)
    k = (x @ wk.T).reshape(B, S, nKV, D).transpose(0, 2, 1, 3)
    v = (x @ wv.T).reshape(B, S, nKV, D).transpose(0, 2, 1, 3)

    def rotate_half(t):                       # reference's (unusual) variant
        t1 = t[..., :D // 2]
        return jnp.concatenate([-t1, t1], axis=-1)

    cos_ = cos[:, None, :, :]
    sin_ = sin[:, None, :, :]
    q = q * cos_ + rotate_half(q) * sin_
    k = k * cos_ + rotate_half(k) * sin_
    n_rep = nH // nKV
    k = jnp.repeat(k, n_rep, axis=1)
    v = jnp.repeat(v, n_rep, axis=1)
    scores = jnp.einsum('bhqd,bhkd->bhqk', q, k) / math.sqrt(D) + mask
    w = jax.nn.softmax(scores.astype(jnp.float32), axis=-1).astype(x.dtype)
    ctx = jnp.einsum('bhqk,bhkd->bhqd', w, v)
    ctx = ctx.transpose(0, 2, 1, 3).reshape(B, S, nH * D)
    return ctx @ wo.T, w


# ----------------------------- main ------------------------------------------
if __name__ == "__main__":
    cfg = GemmaConfig()
    B, S = 2, 8

    key = jax.random.PRNGKey(0)
    k_w, k_x = jax.random.split(key)

    module = GemmaAttentionPallas(cfg, k_w)

    hidden_states = jax.random.normal(k_x, (B, S, cfg.hidden_size), jnp.float32)
    position_ids = jnp.broadcast_to(
        jnp.arange(S, dtype=jnp.int32)[None, :], (B, S))

    # additive causal mask, batch-shared (1,1,S,S): 0 allowed, -1e9 masked.
    causal = jnp.tril(jnp.ones((S, S), dtype=bool))
    attention_mask = jnp.where(causal, 0.0, -1e9).astype(jnp.float32)
    attention_mask = attention_mask[None, None, :, :]

    out, attn_w = module(hidden_states, attention_mask, position_ids)
    jax.block_until_ready((out, attn_w))

    assert out.shape == (B, S, cfg.hidden_size)
    assert attn_w.shape == (B, cfg.num_attention_heads, S, S)

    # correctness vs. pure-JAX reference of the PyTorch module
    cos, sin = module._rotary(position_ids, hidden_states.dtype)
    out_ref, attn_ref = _reference_forward(
        hidden_states, module.wq, module.wk, module.wv, module.wo,
        cos, sin, attention_mask,
        cfg.num_attention_heads, cfg.num_key_value_heads, cfg.head_dim)
    assert jnp.allclose(out, out_ref, atol=2e-4, rtol=2e-4), \
        float(jnp.max(jnp.abs(out - out_ref)))
    assert jnp.allclose(attn_w, attn_ref, atol=2e-4, rtol=2e-4), \
        float(jnp.max(jnp.abs(attn_w - attn_ref)))

    print("KERNEL_OK")
</pallas_src>

<mosaic_0001>
module attributes {stable_mosaic.version = 11 : i64} {
  func.func @_fused_attn_kernel(%arg0: i32, %arg1: memref<1x8x32xf32, #tpu.memory_space<vmem>>, %arg2: memref<32x224xf32, #tpu.memory_space<vmem>>, %arg3: memref<64x32xf32, #tpu.memory_space<vmem>>, %arg4: memref<1x8x64xf32, #tpu.memory_space<vmem>>, %arg5: memref<1x8x64xf32, #tpu.memory_space<vmem>>, %arg6: memref<1x1x8x8xf32, #tpu.memory_space<vmem>>, %arg7: memref<1x8x32xf32, #tpu.memory_space<vmem>>, %arg8: memref<1x4x8x8xf32, #tpu.memory_space<vmem>>) attributes {dimension_semantics = [#tpu.dimension_semantics<parallel>], iteration_bounds = array<i64: 2>, scalar_prefetch = 0 : i64, scratch_operands = 0 : i64, tpu.core_type = #tpu.core_type<tc>, window_params = [{transform_indices = @transform_0, window_bounds = array<i64: 1, 8, 32>}, {pipeline_mode = #tpu.pipeline_mode<synchronous>, transform_indices = @transform_1, window_bounds = array<i64: 32, 224>}, {pipeline_mode = #tpu.pipeline_mode<synchronous>, transform_indices = @transform_2, window_bounds = array<i64: 64, 32>}, {transform_indices = @transform_3, window_bounds = array<i64: 1, 8, 64>}, {transform_indices = @transform_4, window_bounds = array<i64: 1, 8, 64>}, {pipeline_mode = #tpu.pipeline_mode<synchronous>, transform_indices = @transform_5, window_bounds = array<i64: 1, 1, 8, 8>}, {transform_indices = @transform_6, window_bounds = array<i64: 1, 8, 32>}, {transform_indices = @transform_7, window_bounds = array<i64: 1, 4, 8, 8>}]} {
    %c0 = arith.constant 0 : index
    %c0_0 = arith.constant 0 : index
    %c0_1 = arith.constant 0 : index
    %0 = vector.load %arg1[%c0, %c0_0, %c0_1] : memref<1x8x32xf32, #tpu.memory_space<vmem>>, vector<1x8x32xf32>
    %1 = vector.shape_cast %0 : vector<1x8x32xf32> to vector<8x32xf32>
    %c0_2 = arith.constant 0 : index
    %c0_3 = arith.constant 0 : index
    %2 = vector.load %arg2[%c0_2, %c0_3] : memref<32x224xf32, #tpu.memory_space<vmem>>, vector<32x224xf32>
    %cst = arith.constant dense<0.000000e+00> : vector<8x224xf32>
    %3 = tpu.matmul %1, %2, %cst {dimension_numbers = #tpu.dot_dimension_numbers<[1], [0], [0], [1], [0, 0, 1, 1], [], []>} : vector<8x32xf32>, vector<32x224xf32>, vector<8x224xf32> -> vector<8x224xf32>
    %c0_4 = arith.constant 0 : index
    %c0_5 = arith.constant 0 : index
    %c0_6 = arith.constant 0 : index
    %4 = vector.load %arg4[%c0_4, %c0_5, %c0_6] : memref<1x8x64xf32, #tpu.memory_space<vmem>>, vector<1x8x64xf32>
    %5 = vector.shape_cast %4 : vector<1x8x64xf32> to vector<8x64xf32>
    %c0_7 = arith.constant 0 : index
    %c0_8 = arith.constant 0 : index
    %c0_9 = arith.constant 0 : index
    %6 = vector.load %arg5[%c0_7, %c0_8, %c0_9] : memref<1x8x64xf32, #tpu.memory_space<vmem>>, vector<1x8x64xf32>
    %7 = vector.shape_cast %6 : vector<1x8x64xf32> to vector<8x64xf32>
    %8 = vector.extract_strided_slice %3 {offsets = [0, 0], sizes = [8, 64], strides = [1, 1]} : vector<8x224xf32> to vector<8x64xf32>
    %9 = arith.mulf %8, %5 : vector<8x64xf32>
    %10 = vector.extract_strided_slice %3 {offsets = [0, 128], sizes = [8, 64], strides = [1, 1]} : vector<8x224xf32> to vector<8x64xf32>
    %11 = arith.mulf %10, %7 : vector<8x64xf32>
    %12 = arith.addf %9, %11 : vector<8x64xf32>
    %13 = vector.extract_strided_slice %3 {offsets = [0, 64], sizes = [8, 32], strides = [1, 1]} : vector<8x224xf32> to vector<8x32xf32>
    %14 = vector.extract_strided_slice %5 {offsets = [0, 0], sizes = [8, 32], strides = [1, 1]} : vector<8x64xf32> to vector<8x32xf32>
    %15 = arith.mulf %13, %14 : vector<8x32xf32>
    %16 = vector.extract_strided_slice %3 {offsets = [0, 192], sizes = [8, 32], strides = [1, 1]} : vector<8x224xf32> to vector<8x32xf32>
    %17 = vector.extract_strided_slice %7 {offsets = [0, 0], sizes = [8, 32], strides = [1, 1]} : vector<8x64xf32> to vector<8x32xf32>
    %18 = arith.mulf %16, %17 : vector<8x32xf32>
    %19 = arith.addf %15, %18 : vector<8x32xf32>
    %20 = vector.extract_strided_slice %3 {offsets = [0, 96], sizes = [8, 32], strides = [1, 1]} : vector<8x224xf32> to vector<8x32xf32>
    %c0_10 = arith.constant 0 : index
    %c0_11 = arith.constant 0 : index
    %c0_12 = arith.constant 0 : index
    %c0_13 = arith.constant 0 : index
    %21 = vector.load %arg6[%c0_10, %c0_11, %c0_12, %c0_13] : memref<1x1x8x8xf32, #tpu.memory_space<vmem>>, vector<1x1x8x8xf32>
    %22 = vector.shape_cast %21 : vector<1x1x8x8xf32> to vector<8x8xf32>
    %23 = vector.extract_strided_slice %12 {offsets = [0, 0], sizes = [8, 16], strides = [1, 1]} : vector<8x64xf32> to vector<8x16xf32>
    %24 = vector.extract_strided_slice %19 {offsets = [0, 0], sizes = [8, 16], strides = [1, 1]} : vector<8x32xf32> to vector<8x16xf32>
    %cst_14 = arith.constant dense<0.000000e+00> : vector<8x8xf32>
    %25 = tpu.matmul %23, %24, %cst_14 {dimension_numbers = #tpu.dot_dimension_numbers<[1], [1], [0], [0], [0, 0, 1, 0], [], []>} : vector<8x16xf32>, vector<8x16xf32>, vector<8x8xf32> -> vector<8x8xf32>
    %cst_15 = arith.constant 2.500000e-01 : f32
    %26 = vector.broadcast %cst_15 : f32 to vector<8x8xf32>
    %27 = arith.mulf %25, %26 : vector<8x8xf32>
    %28 = arith.addf %27, %22 : vector<8x8xf32>
    %cst_16 = arith.constant dense<0xFF800000> : vector<8xf32>
    %29 = vector.multi_reduction <maximumf>, %28, %cst_16 [1] : vector<8x8xf32> to vector<8xf32>
    %30 = vector.shape_cast %29 : vector<8xf32> to vector<8x1xf32>
    %31 = vector.broadcast %30 : vector<8x1xf32> to vector<8x8xf32>
    %32 = arith.subf %28, %31 : vector<8x8xf32>
    %33 = math.exp %32 : vector<8x8xf32>
    %cst_17 = arith.constant dense<0.000000e+00> : vector<8xf32>
    %34 = vector.multi_reduction <add>, %33, %cst_17 [1] : vector<8x8xf32> to vector<8xf32>
    %35 = vector.shape_cast %34 : vector<8xf32> to vector<8x1xf32>
    %36 = vector.broadcast %35 : vector<8x1xf32> to vector<8x8xf32>
    %37 = arith.divf %33, %36 : vector<8x8xf32>
    %c0_18 = arith.constant 0 : index
    %c0_19 = arith.constant 0 : index
    %c0_20 = arith.constant 0 : index
    %c0_21 = arith.constant 0 : index
    %38 = vector.load %arg8[%c0_18, %c0_19, %c0_20, %c0_21] : memref<1x4x8x8xf32, #tpu.memory_space<vmem>>, vector<1x1x8x8xf32>
    %39 = vector.shape_cast %38 : vector<1x1x8x8xf32> to vector<8x8xf32>
    %40 = vector.shape_cast %37 : vector<8x8xf32> to vector<1x1x8x8xf32>
    tpu.vector_store %arg8[%c0_18, %c0_19, %c0_20, %c0_21], %40 {strides = array<i32>} : memref<1x4x8x8xf32, #tpu.memory_space<vmem>>, vector<1x1x8x8xf32>,
    %41 = vector.extract_strided_slice %20 {offsets = [0, 0], sizes = [8, 16], strides = [1, 1]} : vector<8x32xf32> to vector<8x16xf32>
    %cst_22 = arith.constant dense<0.000000e+00> : vector<8x16xf32>
    %42 = tpu.matmul %37, %41, %cst_22 {dimension_numbers = #tpu.dot_dimension_numbers<[1], [0], [0], [1], [0, 0, 1, 1], [], []>} : vector<8x8xf32>, vector<8x16xf32>, vector<8x16xf32> -> vector<8x16xf32>
    %43 = vector.extract_strided_slice %12 {offsets = [0, 16], sizes = [8, 16], strides = [1, 1]} : vector<8x64xf32> to vector<8x16xf32>
    %44 = vector.extract_strided_slice %19 {offsets = [0, 0], sizes = [8, 16], strides = [1, 1]} : vector<8x32xf32> to vector<8x16xf32>
    %cst_23 = arith.constant dense<0.000000e+00> : vector<8x8xf32>
    %45 = tpu.matmul %43, %44, %cst_23 {dimension_numbers = #tpu.dot_dimension_numbers<[1], [1], [0], [0], [0, 0, 1, 0], [], []>} : vector<8x16xf32>, vector<8x16xf32>, vector<8x8xf32> -> vector<8x8xf32>
    %cst_24 = arith.constant 2.500000e-01 : f32
    %46 = vector.broadcast %cst_24 : f32 to vector<8x8xf32>
    %47 = arith.mulf %45, %46 : vector<8x8xf32>
    %48 = arith.addf %47, %22 : vector<8x8xf32>
    %cst_25 = arith.constant dense<0xFF800000> : vector<8xf32>
    %49 = vector.multi_reduction <maximumf>, %48, %cst_25 [1] : vector<8x8xf32> to vector<8xf32>
    %50 = vector.shape_cast %49 : vector<8xf32> to vector<8x1xf32>
    %51 = vector.broadcast %50 : vector<8x1xf32> to vector<8x8xf32>
    %52 = arith.subf %48, %51 : vector<8x8xf32>
    %53 = math.exp %52 : vector<8x8xf32>
    %cst_26 = arith.constant dense<0.000000e+00> : vector<8xf32>
    %54 = vector.multi_reduction <add>, %53, %cst_26 [1] : vector<8x8xf32> to vector<8xf32>
    %55 = vector.shape_cast %54 : vector<8xf32> to vector<8x1xf32>
    %56 = vector.broadcast %55 : vector<8x1xf32> to vector<8x8xf32>
    %57 = arith.divf %53, %56 : vector<8x8xf32>
    %c0_27 = arith.constant 0 : index
    %c1 = arith.constant 1 : index
    %c0_28 = arith.constant 0 : index
    %c0_29 = arith.constant 0 : index
    %58 = vector.load %arg8[%c0_27, %c1, %c0_28, %c0_29] : memref<1x4x8x8xf32, #tpu.memory_space<vmem>>, vector<1x1x8x8xf32>
    %59 = vector.shape_cast %58 : vector<1x1x8x8xf32> to vector<8x8xf32>
    %60 = vector.shape_cast %57 : vector<8x8xf32> to vector<1x1x8x8xf32>
    tpu.vector_store %arg8[%c0_27, %c1, %c0_28, %c0_29], %60 {strides = array<i32>} : memref<1x4x8x8xf32, #tpu.memory_space<vmem>>, vector<1x1x8x8xf32>,
    %61 = vector.extract_strided_slice %20 {offsets = [0, 0], sizes = [8, 16], strides = [1, 1]} : vector<8x32xf32> to vector<8x16xf32>
    %cst_30 = arith.constant dense<0.000000e+00> : vector<8x16xf32>
    %62 = tpu.matmul %57, %61, %cst_30 {dimension_numbers = #tpu.dot_dimension_numbers<[1], [0], [0], [1], [0, 0, 1, 1], [], []>} : vector<8x8xf32>, vector<8x16xf32>, vector<8x16xf32> -> vector<8x16xf32>
    %63 = vector.extract_strided_slice %12 {offsets = [0, 32], sizes = [8, 16], strides = [1, 1]} : vector<8x64xf32> to vector<8x16xf32>
    %64 = vector.extract_strided_slice %19 {offsets = [0, 16], sizes = [8, 16], strides = [1, 1]} : vector<8x32xf32> to vector<8x16xf32>
    %cst_31 = arith.constant dense<0.000000e+00> : vector<8x8xf32>
    %65 = tpu.matmul %63, %64, %cst_31 {dimension_numbers = #tpu.dot_dimension_numbers<[1], [1], [0], [0], [0, 0, 1, 0], [], []>} : vector<8x16xf32>, vector<8x16xf32>, vector<8x8xf32> -> vector<8x8xf32>
    %cst_32 = arith.constant 2.500000e-01 : f32
    %66 = vector.broadcast %cst_32 : f32 to vector<8x8xf32>
    %67 = arith.mulf %65, %66 : vector<8x8xf32>
    %68 = arith.addf %67, %22 : vector<8x8xf32>
    %cst_33 = arith.constant dense<0xFF800000> : vector<8xf32>
    %69 = vector.multi_reduction <maximumf>, %68, %cst_33 [1] : vector<8x8xf32> to vector<8xf32>
    %70 = vector.shape_cast %69 : vector<8xf32> to vector<8x1xf32>
    %71 = vector.broadcast %70 : vector<8x1xf32> to vector<8x8xf32>
    %72 = arith.subf %68, %71 : vector<8x8xf32>
    %73 = math.exp %72 : vector<8x8xf32>
    %cst_34 = arith.constant dense<0.000000e+00> : vector<8xf32>
    %74 = vector.multi_reduction <add>, %73, %cst_34 [1] : vector<8x8xf32> to vector<8xf32>
    %75 = vector.shape_cast %74 : vector<8xf32> to vector<8x1xf32>
    %76 = vector.broadcast %75 : vector<8x1xf32> to vector<8x8xf32>
    %77 = arith.divf %73, %76 : vector<8x8xf32>
    %c0_35 = arith.constant 0 : index
    %c2 = arith.constant 2 : index
    %c0_36 = arith.constant 0 : index
    %c0_37 = arith.constant 0 : index
    %78 = vector.load %arg8[%c0_35, %c2, %c0_36, %c0_37] : memref<1x4x8x8xf32, #tpu.memory_space<vmem>>, vector<1x1x8x8xf32>
    %79 = vector.shape_cast %78 : vector<1x1x8x8xf32> to vector<8x8xf32>
    %80 = vector.shape_cast %77 : vector<8x8xf32> to vector<1x1x8x8xf32>
    tpu.vector_store %arg8[%c0_35, %c2, %c0_36, %c0_37], %80 {strides = array<i32>} : memref<1x4x8x8xf32, #tpu.memory_space<vmem>>, vector<1x1x8x8xf32>,
    %81 = vector.extract_strided_slice %20 {offsets = [0, 16], sizes = [8, 16], strides = [1, 1]} : vector<8x32xf32> to vector<8x16xf32>
    %cst_38 = arith.constant dense<0.000000e+00> : vector<8x16xf32>
    %82 = tpu.matmul %77, %81, %cst_38 {dimension_numbers = #tpu.dot_dimension_numbers<[1], [0], [0], [1], [0, 0, 1, 1], [], []>} : vector<8x8xf32>, vector<8x16xf32>, vector<8x16xf32> -> vector<8x16xf32>
    %83 = vector.extract_strided_slice %12 {offsets = [0, 48], sizes = [8, 16], strides = [1, 1]} : vector<8x64xf32> to vector<8x16xf32>
    %84 = vector.extract_strided_slice %19 {offsets = [0, 16], sizes = [8, 16], strides = [1, 1]} : vector<8x32xf32> to vector<8x16xf32>
    %cst_39 = arith.constant dense<0.000000e+00> : vector<8x8xf32>
    %85 = tpu.matmul %83, %84, %cst_39 {dimension_numbers = #tpu.dot_dimension_numbers<[1], [1], [0], [0], [0, 0, 1, 0], [], []>} : vector<8x16xf32>, vector<8x16xf32>, vector<8x8xf32> -> vector<8x8xf32>
    %cst_40 = arith.constant 2.500000e-01 : f32
    %86 = vector.broadcast %cst_40 : f32 to vector<8x8xf32>
    %87 = arith.mulf %85, %86 : vector<8x8xf32>
    %88 = arith.addf %87, %22 : vector<8x8xf32>
    %cst_41 = arith.constant dense<0xFF800000> : vector<8xf32>
    %89 = vector.multi_reduction <maximumf>, %88, %cst_41 [1] : vector<8x8xf32> to vector<8xf32>
    %90 = vector.shape_cast %89 : vector<8xf32> to vector<8x1xf32>
    %91 = vector.broadcast %90 : vector<8x1xf32> to vector<8x8xf32>
    %92 = arith.subf %88, %91 : vector<8x8xf32>
    %93 = math.exp %92 : vector<8x8xf32>
    %cst_42 = arith.constant dense<0.000000e+00> : vector<8xf32>
    %94 = vector.multi_reduction <add>, %93, %cst_42 [1] : vector<8x8xf32> to vector<8xf32>
    %95 = vector.shape_cast %94 : vector<8xf32> to vector<8x1xf32>
    %96 = vector.broadcast %95 : vector<8x1xf32> to vector<8x8xf32>
    %97 = arith.divf %93, %96 : vector<8x8xf32>
    %c0_43 = arith.constant 0 : index
    %c3 = arith.constant 3 : index
    %c0_44 = arith.constant 0 : index
    %c0_45 = arith.constant 0 : index
    %98 = vector.load %arg8[%c0_43, %c3, %c0_44, %c0_45] : memref<1x4x8x8xf32, #tpu.memory_space<vmem>>, vector<1x1x8x8xf32>
    %99 = vector.shape_cast %98 : vector<1x1x8x8xf32> to vector<8x8xf32>
    %100 = vector.shape_cast %97 : vector<8x8xf32> to vector<1x1x8x8xf32>
    tpu.vector_store %arg8[%c0_43, %c3, %c0_44, %c0_45], %100 {strides = array<i32>} : memref<1x4x8x8xf32, #tpu.memory_space<vmem>>, vector<1x1x8x8xf32>,
    %101 = vector.extract_strided_slice %20 {offsets = [0, 16], sizes = [8, 16], strides = [1, 1]} : vector<8x32xf32> to vector<8x16xf32>
    %cst_46 = arith.constant dense<0.000000e+00> : vector<8x16xf32>
    %102 = tpu.matmul %97, %101, %cst_46 {dimension_numbers = #tpu.dot_dimension_numbers<[1], [0], [0], [1], [0, 0, 1, 1], [], []>} : vector<8x8xf32>, vector<8x16xf32>, vector<8x16xf32> -> vector<8x16xf32>
    %103 = tpu.concatenate %42, %62, %82, %102 in 1 : vector<8x16xf32>, vector<8x16xf32>, vector<8x16xf32>, vector<8x16xf32> -> vector<8x64xf32>
    %c0_47 = arith.constant 0 : index
    %c0_48 = arith.constant 0 : index
    %104 = vector.load %arg3[%c0_47, %c0_48] : memref<64x32xf32, #tpu.memory_space<vmem>>, vector<64x32xf32>
    %cst_49 = arith.constant dense<0.000000e+00> : vector<8x32xf32>
    %105 = tpu.matmul %103, %104, %cst_49 {dimension_numbers = #tpu.dot_dimension_numbers<[1], [0], [0], [1], [0, 0, 1, 1], [], []>} : vector<8x64xf32>, vector<64x32xf32>, vector<8x32xf32> -> vector<8x32xf32>
    %c0_50 = arith.constant 0 : index
    %c0_51 = arith.constant 0 : index
    %c0_52 = arith.constant 0 : index
    %106 = vector.load %arg7[%c0_50, %c0_51, %c0_52] : memref<1x8x32xf32, #tpu.memory_space<vmem>>, vector<1x8x32xf32>
    %107 = vector.shape_cast %106 : vector<1x8x32xf32> to vector<8x32xf32>
    %108 = vector.shape_cast %105 : vector<8x32xf32> to vector<1x8x32xf32>
    tpu.vector_store %arg7[%c0_50, %c0_51, %c0_52], %108 {strides = array<i32>} : memref<1x8x32xf32, #tpu.memory_space<vmem>>, vector<1x8x32xf32>,
    return
  }
  func.func @transform_0(%arg0: i32) -> (i32, i32, i32) {
    %c0_i32 = arith.constant 0 : i32
    %c0_i32_0 = arith.constant 0 : i32
    %c0_i32_1 = arith.constant 0 : i32
    return %arg0, %c0_i32, %c0_i32_0 : i32, i32, i32
  }
  func.func @transform_1(%arg0: i32) -> (i32, i32) {
    %c0_i32 = arith.constant 0 : i32
    %c0_i32_0 = arith.constant 0 : i32
    %c0_i32_1 = arith.constant 0 : i32
    return %c0_i32, %c0_i32_0 : i32, i32
  }
  func.func @transform_2(%arg0: i32) -> (i32, i32) {
    %c0_i32 = arith.constant 0 : i32
    %c0_i32_0 = arith.constant 0 : i32
    %c0_i32_1 = arith.constant 0 : i32
    return %c0_i32, %c0_i32_0 : i32, i32
  }
  func.func @transform_3(%arg0: i32) -> (i32, i32, i32) {
    %c0_i32 = arith.constant 0 : i32
    %c0_i32_0 = arith.constant 0 : i32
    %c0_i32_1 = arith.constant 0 : i32
    return %arg0, %c0_i32, %c0_i32_0 : i32, i32, i32
  }
  func.func @transform_4(%arg0: i32) -> (i32, i32, i32) {
    %c0_i32 = arith.constant 0 : i32
    %c0_i32_0 = arith.constant 0 : i32
    %c0_i32_1 = arith.constant 0 : i32
    return %arg0, %c0_i32, %c0_i32_0 : i32, i32, i32
  }
  func.func @transform_5(%arg0: i32) -> (i32, i32, i32, i32) {
    %c0_i32 = arith.constant 0 : i32
    %c0_i32_0 = arith.constant 0 : i32
    %c0_i32_1 = arith.constant 0 : i32
    %c0_i32_2 = arith.constant 0 : i32
    %c0_i32_3 = arith.constant 0 : i32
    return %c0_i32, %c0_i32_0, %c0_i32_1, %c0_i32_2 : i32, i32, i32, i32
  }
  func.func @transform_6(%arg0: i32) -> (i32, i32, i32) {
    %c0_i32 = arith.constant 0 : i32
    %c0_i32_0 = arith.constant 0 : i32
    %c0_i32_1 = arith.constant 0 : i32
    return %arg0, %c0_i32, %c0_i32_0 : i32, i32, i32
  }
  func.func @transform_7(%arg0: i32) -> (i32, i32, i32, i32) {
    %c0_i32 = arith.constant 0 : i32
    %c0_i32_0 = arith.constant 0 : i32
    %c0_i32_1 = arith.constant 0 : i32
    %c0_i32_2 = arith.constant 0 : i32
    return %arg0, %c0_i32, %c0_i32_0, %c0_i32_1 : i32, i32, i32, i32
  }
}

</mosaic_0001>

<llo_original>
// kernel: tpu_custom_call.1
$region0: #{tpu_custom_call.1}
  #allocation0 [shape = 'u32[]', space=smem, size = 0x4, offset = 0x4, fixed_abs, tag = 'smem constant byte address 0x4 - core index']
  #allocation1 [shape = 'u32[144,128]{1,0:T(1,128)}', space=vmem, size = 0x12000, scoped, tag = 'internal scratch']
  %s0 = inlined_call_operand.vmem [shape: f32[2,8,32], index: 0, kind: input, shape index: {}]
  %s1 = inlined_call_operand.vmem [shape: f32[32,224], index: 1, kind: input, shape index: {}]
  %s2 = inlined_call_operand.vmem [shape: f32[64,32], index: 2, kind: input, shape index: {}]
  %s3 = inlined_call_operand.vmem [shape: f32[2,8,64], index: 3, kind: input, shape index: {}]
  %s4 = inlined_call_operand.hbm [shape: f32[2,8,64], index: 4, kind: input, shape index: {}]
  %s5 = inlined_call_operand.vmem [shape: f32[1,1,8,8], index: 5, kind: input, shape index: {}]
  %s6 = inlined_call_operand.hbm [shape: f32[2,8,32], index: 6, kind: output, shape index: {0}]
  %s7 = inlined_call_operand.hbm [shape: f32[2,4,8,8], index: 7, kind: output, shape index: {1}]
  %8 = xla_tuple %s6, %s7
  %s9 = sld [smem:[#allocation0]]
  $region69: #{tpu_custom_call.1} parent=0
    _
  %s11 = ssub.s32 1, %s9
  %s12 = scalar_select 0, %s11, %s9
  $region1: #{tpu_custom_call.1} parent=0
    #allocation2 [shape = 'u8[8192]{0}', space=vmem, size = 0x2000, scoped, tag = 'input window, operand 4']
    #allocation3 [shape = 's32[2]{0}', space=sflag, size = 0x8, scoped, tag = 'scoped memory for tpu_custom_call.1']
    #allocation4 [shape = 's32[2]{0}', space=sflag, size = 0x8, scoped, tag = 'scoped memory for tpu_custom_call.1']
    #allocation5 [shape = 'u8[8192]{0}', space=vmem, size = 0x2000, scoped, tag = 'output window, operand 0']
    #allocation6 [shape = 'u8[32768]{0}', space=vmem, size = 0x8000, scoped, tag = 'output window, operand 1']
    #allocation7 [shape = 's32[2]{0}', space=sflag, size = 0x8, scoped, tag = 'scoped memory for tpu_custom_call.1']
    %13 = vsyncpa [#allocation3], 0
    %s14 = scalar_lea.sflag [#allocation3], 1
    %15 = vsyncpa %s14, 0
    %16 = vsyncpa [#allocation4], 0
    %s17 = scalar_lea.sflag [#allocation4], 1
    %18 = vsyncpa %s17, 0
    %19 = vsyncpa [#allocation7], 0
    %s20 = scalar_lea.sflag [#allocation7], 1
    %21 = vsyncpa %s20, 0
    loop: start=0, step=1, limit=4
    $region2: #{tpu_custom_call.1} parent=1 // loop_pre_header
      _
    $region3: #{tpu_custom_call.1} parent=1 // loop_header
      %s23 = sphi 0, %s27
      %p24 = scmp.ge.s32.totalorder %s23, 4
      %s33 = sphi 0, %s35
      %s36 = sphi 0, %s33
      %s37 = sphi 0, %s36
      %s53 = sphi 0, %s37
      %s57 = sphi 0, %s57
      %s59 = sphi 0, %s57
      %s60 = sphi 0, %s59
      %s74 = sphi 0, %s60
      %s78 = sphi 0, %s78
      %s80 = sphi 0, %s78
      %s81 = sphi 0, %s80
      %s95 = sphi 0, %s81
      %s101 = sphi 0, %s103
      %s104 = sphi 0, %s101
      %s105 = sphi 0, %s104
      %s121 = sphi 0, %s105
      %s127 = sphi 0, %s129
      %s130 = sphi 0, %s127
      %s131 = sphi 0, %s130
      %s147 = sphi 0, %s131
      %s151 = sphi 0, %s151
      %s153 = sphi 0, %s151
      %s154 = sphi 0, %s153
      %s168 = sphi 0, %s154
      %s174 = sphi 0, %s176
      %s177 = sphi 0, %s174
      %s178 = sphi 0, %s177
      %s194 = sphi 0, %s178
      %s200 = sphi 0, %s202
      %s203 = sphi 0, %s200
      %s204 = sphi 0, %s203
      %s220 = sphi 0, %s204
    $region4: #{tpu_custom_call.1} parent=1 // loop_header_branch
      %26 = sbr.rel (%p24) target = $region8
    $region5: #{tpu_custom_call.1} parent=1 // loop_body
      %s28 = ssub.s32 %s23, 1
      %s29 = ssub.s32 %s23, 2
      %s30 = sadd.s32 %s23, 1
      %s31 = ssub.s32 %s23, %s30
      %p32 = scmp.eq.s32.totalorder %s31, 0
      %s34 = sadd.s32 %s33, 1
      %s35 = scalar_select %p32, %s33, %s34
      %p38 = pneg %p32
      %p39 = scmp.eq.s32.totalorder %s23, 1
      %p40 = por %p38, %p39
      %p41 = scmp.ne.s32.totalorder %s33, %s36
      %p42 = scmp.eq.s32.totalorder %s23, 0
      %p43 = por %p41, %p42
      %p44 = scmp.ne.s32.totalorder %s33, %s36
      %p45 = scmp.eq.s32.totalorder %s28, 1
      %p46 = por %p44, %p45
      %p47 = scmp.ne.s32.totalorder %s36, %s37
      %p48 = scmp.eq.s32.totalorder %s28, 0
      %p49 = por %p47, %p48
      %p50 = scmp.ne.s32.totalorder %s36, %s37
      %p51 = scmp.eq.s32.totalorder %s29, 1
      %p52 = por %p50, %p51
      %p54 = scmp.ne.s32.totalorder %s37, %s53
      %p55 = scmp.eq.s32.totalorder %s29, 0
      %p56 = por %p54, %p55
      %s58 = sadd.s32 %s57, 1
      %p61 = scmp.eq.s32.totalorder %s23, 1
      %p62 = scmp.ne.s32.totalorder %s57, %s59
      %p63 = scmp.eq.s32.totalorder %s23, 0
      %p64 = por %p62, %p63
      %p65 = scmp.ne.s32.totalorder %s57, %s59
      %p66 = scmp.eq.s32.totalorder %s28, 1
      %p67 = por %p65, %p66
      %p68 = scmp.ne.s32.totalorder %s59, %s60
      %p69 = scmp.eq.s32.totalorder %s28, 0
      %p70 = por %p68, %p69
      %p71 = scmp.ne.s32.totalorder %s59, %s60
      %p72 = scmp.eq.s32.totalorder %s29, 1
      %p73 = por %p71, %p72
      %p75 = scmp.ne.s32.totalorder %s60, %s74
      %p76 = scmp.eq.s32.totalorder %s29, 0
      %p77 = por %p75, %p76
      %s79 = sadd.s32 %s78, 1
      %p82 = scmp.eq.s32.totalorder %s23, 1
      %p83 = scmp.ne.s32.totalorder %s78, %s80
      %p84 = scmp.eq.s32.totalorder %s23, 0
      %p85 = por %p83, %p84
      %p86 = scmp.ne.s32.totalorder %s78, %s80
      %p87 = scmp.eq.s32.totalorder %s28, 1
      %p88 = por %p86, %p87
      %p89 = scmp.ne.s32.totalorder %s80, %s81
      %p90 = scmp.eq.s32.totalorder %s28, 0
      %p91 = por %p89, %p90
      %p92 = scmp.ne.s32.totalorder %s80, %s81
      %p93 = scmp.eq.s32.totalorder %s29, 1
      %p94 = por %p92, %p93
      %p96 = scmp.ne.s32.totalorder %s81, %s95
      %p97 = scmp.eq.s32.totalorder %s29, 0
      %p98 = por %p96, %p97
      %s99 = ssub.s32 %s23, %s30
      %p100 = scmp.eq.s32.totalorder %s99, 0
      %s102 = sadd.s32 %s101, 1
      %s103 = scalar_select %p100, %s101, %s102
      %p106 = pneg %p100
      %p107 = scmp.eq.s32.totalorder %s23, 1
      %p108 = por %p106, %p107
      %p109 = scmp.ne.s32.totalorder %s101, %s104
      %p110 = scmp.eq.s32.totalorder %s23, 0
      %p111 = por %p109, %p110
      %p112 = scmp.ne.s32.totalorder %s101, %s104
      %p113 = scmp.eq.s32.totalorder %s28, 1
      %p114 = por %p112, %p113
      %p115 = scmp.ne.s32.totalorder %s104, %s105
      %p116 = scmp.eq.s32.totalorder %s28, 0
      %p117 = por %p115, %p116
      %p118 = scmp.ne.s32.totalorder %s104, %s105
      %p119 = scmp.eq.s32.totalorder %s29, 1
      %p120 = por %p118, %p119
      %p122 = scmp.ne.s32.totalorder %s105, %s121
      %p123 = scmp.eq.s32.totalorder %s29, 0
      %p124 = por %p122, %p123
      %s125 = ssub.s32 %s23, %s30
      %p126 = scmp.eq.s32.totalorder %s125, 0
      %s128 = sadd.s32 %s127, 1
      %s129 = scalar_select %p126, %s127, %s128
      %p132 = pneg %p126
      %p133 = scmp.eq.s32.totalorder %s23, 1
      %p134 = por %p132, %p133
      %p135 = scmp.ne.s32.totalorder %s127, %s130
      %p136 = scmp.eq.s32.totalorder %s23, 0
      %p137 = por %p135, %p136
      %p138 = scmp.ne.s32.totalorder %s127, %s130
      %p139 = scmp.eq.s32.totalorder %s28, 1
      %p140 = por %p138, %p139
      %p141 = scmp.ne.s32.totalorder %s130, %s131
      %p142 = scmp.eq.s32.totalorder %s28, 0
      %p143 = por %p141, %p142
      %p144 = scmp.ne.s32.totalorder %s130, %s131
      %p145 = scmp.eq.s32.totalorder %s29, 1
      %p146 = por %p144, %p145
      %p148 = scmp.ne.s32.totalorder %s131, %s147
      %p149 = scmp.eq.s32.totalorder %s29, 0
      %p150 = por %p148, %p149
      %s152 = sadd.s32 %s151, 1
      %p155 = scmp.eq.s32.totalorder %s23, 1
      %p156 = scmp.ne.s32.totalorder %s151, %s153
      %p157 = scmp.eq.s32.totalorder %s23, 0
      %p158 = por %p156, %p157
      %p159 = scmp.ne.s32.totalorder %s151, %s153
      %p160 = scmp.eq.s32.totalorder %s28, 1
      %p161 = por %p159, %p160
      %p162 = scmp.ne.s32.totalorder %s153, %s154
      %p163 = scmp.eq.s32.totalorder %s28, 0
      %p164 = por %p162, %p163
      %p165 = scmp.ne.s32.totalorder %s153, %s154
      %p166 = scmp.eq.s32.totalorder %s29, 1
      %p167 = por %p165, %p166
      %p169 = scmp.ne.s32.totalorder %s154, %s168
      %p170 = scmp.eq.s32.totalorder %s29, 0
      %p171 = por %p169, %p170
      %s172 = ssub.s32 %s23, %s30
      %p173 = scmp.eq.s32.totalorder %s172, 0
      %s175 = sadd.s32 %s174, 1
      %s176 = scalar_select %p173, %s174, %s175
      %p179 = pneg %p173
      %p180 = scmp.eq.s32.totalorder %s23, 1
      %p181 = por %p179, %p180
      %p182 = scmp.ne.s32.totalorder %s174, %s177
      %p183 = scmp.eq.s32.totalorder %s23, 0
      %p184 = por %p182, %p183
      %p185 = scmp.ne.s32.totalorder %s174, %s177
      %p186 = scmp.eq.s32.totalorder %s28, 1
      %p187 = por %p185, %p186
      %p188 = scmp.ne.s32.totalorder %s177, %s178
      %p189 = scmp.eq.s32.totalorder %s28, 0
      %p190 = por %p188, %p189
      %p191 = scmp.ne.s32.totalorder %s177, %s178
      %p192 = scmp.eq.s32.totalorder %s29, 1
      %p193 = por %p191, %p192
      %p195 = scmp.ne.s32.totalorder %s178, %s194
      %p196 = scmp.eq.s32.totalorder %s29, 0
      %p197 = por %p195, %p196
      %s198 = ssub.s32 %s23, %s30
      %p199 = scmp.eq.s32.totalorder %s198, 0
      %s201 = sadd.s32 %s200, 1
      %s202 = scalar_select %p199, %s200, %s201
      %p205 = pneg %p199
      %p206 = scmp.eq.s32.totalorder %s23, 1
      %p207 = por %p205, %p206
      %p208 = scmp.ne.s32.totalorder %s200, %s203
      %p209 = scmp.eq.s32.totalorder %s23, 0
      %p210 = por %p208, %p209
      %p211 = scmp.ne.s32.totalorder %s200, %s203
      %p212 = scmp.eq.s32.totalorder %s28, 1
      %p213 = por %p211, %p212
      %p214 = scmp.ne.s32.totalorder %s203, %s204
      %p215 = scmp.eq.s32.totalorder %s28, 0
      %p216 = por %p214, %p215
      %p217 = scmp.ne.s32.totalorder %s203, %s204
      %p218 = scmp.eq.s32.totalorder %s29, 1
      %p219 = por %p217, %p218
      %p221 = scmp.ne.s32.totalorder %s204, %s220
      %p222 = scmp.eq.s32.totalorder %s29, 0
      %p223 = por %p221, %p222
      %p224 = scmp.le.s32.totalorder 1, %s23
      %p225 = scmp.lt.s32.totalorder %s23, 3
      %p226 = pnand %p224, %p225
      %p227 = pneg %p226
      // Predicated region
      $region9: #{tpu_custom_call.1} parent=5 // pred_check
        _
      $region10: #{tpu_custom_call.1} parent=5 // pred_check_branch
        %229 = sbr.rel (%p226) target = $region12
      $region11: #{tpu_custom_call.1} parent=5 // pred_region
        %s230 = ssub.s32 %s23, 1
        // Predicated region
        $region13: #{tpu_custom_call.1} parent=11 // pred_check
          %p231 = pneg %p70
        $region14: #{tpu_custom_call.1} parent=11 // pred_check_branch
          %233 = sbr.rel (%p231) target = $region16
        $region15: #{tpu_custom_call.1} parent=11 // pred_region
          _
        $region16: #{tpu_custom_call.1} parent=11 // pred_fallthru
          _
        // Predicated region
        $region17: #{tpu_custom_call.1} parent=11 // pred_check
          %p234 = pneg %p91
        $region18: #{tpu_custom_call.1} parent=11 // pred_check_branch
          %236 = sbr.rel (%p234) target = $region20
        $region19: #{tpu_custom_call.1} parent=11 // pred_region
          _
        $region20: #{tpu_custom_call.1} parent=11 // pred_fallthru
          _
        // Predicated region
        $region21: #{tpu_custom_call.1} parent=11 // pred_check
          %p237 = pneg %p164
        $region22: #{tpu_custom_call.1} parent=11 // pred_check_branch
          %239 = sbr.rel (%p237) target = $region24
        $region23: #{tpu_custom_call.1} parent=11 // pred_region
          _
        $region24: #{tpu_custom_call.1} parent=11 // pred_fallthru
          _
      $region12: #{tpu_custom_call.1} parent=5 // pred_fallthru
        _
      %p240 = scmp.lt.s32.totalorder %s23, 2
      // Predicated region
      $region25: #{tpu_custom_call.1} parent=5 // pred_check
        %p241 = pneg %p240
      $region26: #{tpu_custom_call.1} parent=5 // pred_check_branch
        %243 = sbr.rel (%p241) target = $region28
      $region27: #{tpu_custom_call.1} parent=5 // pred_region
        // Predicated region
        $region29: #{tpu_custom_call.1} parent=27 // pred_check
          %p244 = pneg %p43
        $region30: #{tpu_custom_call.1} parent=27 // pred_check_branch
          %246 = sbr.rel (%p244) target = $region32
        $region31: #{tpu_custom_call.1} parent=27 // pred_region
          %p247 = scmp.lt.s32.totalorder %s23, 1
          %s248 = scalar_select %p247, %s23, 1
          %s249 = smul.addr %s248, 8
          %s250 = scalar_lea.vmem %s0, %s249
        $region32: #{tpu_custom_call.1} parent=27 // pred_fallthru
          _
        // Predicated region
        $region33: #{tpu_custom_call.1} parent=27 // pred_check
          %p251 = pneg %p111
        $region34: #{tpu_custom_call.1} parent=27 // pred_check_branch
          %253 = sbr.rel (%p251) target = $region36
        $region35: #{tpu_custom_call.1} parent=27 // pred_region
          %p254 = scmp.lt.s32.totalorder %s23, 1
          %s255 = scalar_select %p254, %s23, 1
          %s256 = smul.addr %s255, 8
          %s257 = scalar_lea.vmem %s3, %s256
        $region36: #{tpu_custom_call.1} parent=27 // pred_fallthru
          _
        // Predicated region
        $region37: #{tpu_custom_call.1} parent=27 // pred_check
          %p258 = pneg %p137
        $region38: #{tpu_custom_call.1} parent=27 // pred_check_branch
          %260 = sbr.rel (%p258) target = $region40
        $region39: #{tpu_custom_call.1} parent=27 // pred_region
          %s261 = sand.u32 %s127, 1
          %s262 = scalar_lea.sflag [#allocation3], %s261
          %s263 = sand.u32 %s127, 1
          %s264 = smul.addr %s263, 8
          %s265 = scalar_lea.vmem [#allocation2], %s264
          %s267 = ssub.s32 128, 128
          %268 = vsyncadd %s262, %s267
          %s269 = smul.addr %s23, 128
          %s270 = scalar_lea.hbm %s4, %s269
          %s272 = sshll.u32 %s265, 4
          %s273 = int_to_ptr.vmem [resolvable:$true] %s272
          %275 = dma.hbm_to_vmem [thread:$0]  %s270, 128, %s273, %s262
        $region40: #{tpu_custom_call.1} parent=27 // pred_fallthru
          _
      $region28: #{tpu_custom_call.1} parent=5 // pred_fallthru
        _
      %p276 = scmp.le.s32.totalorder 1, %s23
      %p277 = scmp.lt.s32.totalorder %s23, 3
      %p278 = pnand %p276, %p277
      %p279 = pneg %p278
      // Predicated region
      $region41: #{tpu_custom_call.1} parent=5 // pred_check
        _
      $region42: #{tpu_custom_call.1} parent=5 // pred_check_branch
        %281 = sbr.rel (%p278) target = $region44
      $region43: #{tpu_custom_call.1} parent=5 // pred_region
        %s282 = ssub.s32 %s23, 1
        %s283 = sand.u32 %s130, 1
        %s284 = scalar_lea.sflag [#allocation3], %s283
        %s285 = sand.u32 %s130, 1
        %s286 = smul.addr %s285, 8
        %s287 = scalar_lea.vmem [#allocation2], %s286
        // Predicated region
        $region45: #{tpu_custom_call.1} parent=43 // pred_check
          %p288 = pneg %p143
        $region46: #{tpu_custom_call.1} parent=43 // pred_check_branch
          %290 = sbr.rel (%p288) target = $region48
        $region47: #{tpu_custom_call.1} parent=43 // pred_region
          %291 = dma.done %s284, 128
        $region48: #{tpu_custom_call.1} parent=43 // pred_fallthru
          _
        %p292 = scmp.lt.s32.totalorder %s28, 1
        %s293 = scalar_select %p292, %s28, 1
        %s294 = smul.addr %s293, 8
        %s295 = scalar_lea.vmem %s0, %s294
        %p296 = pneg %p49
        %p297 = pneg %p46
        %p298 = pneg %p70
        %p299 = pneg %p67
        %p300 = pneg %p91
        %p301 = pneg %p88
        %p302 = scmp.lt.s32.totalorder %s28, 1
        %s303 = scalar_select %p302, %s28, 1
        %s304 = smul.addr %s303, 8
        %s305 = scalar_lea.vmem %s3, %s304
        %p306 = pneg %p117
        %p307 = pneg %p114
        %s308 = sand.u32 %s130, 1
        %s309 = scalar_lea.sflag [#allocation3], %s308
        %s310 = sand.u32 %s130, 1
        %s311 = smul.addr %s310, 8
        %s312 = scalar_lea.vmem [#allocation2], %s311
        %p313 = pneg %p143
        %p314 = pneg %p140
        %p315 = pneg %p164
        %p316 = pneg %p161
        %p317 = pneg %p190
        %p318 = pneg %p187
        %s319 = sand.u32 %s177, 1
        %s320 = scalar_lea.sflag [#allocation4], %s319
        %s321 = sand.u32 %s177, 1
        %s322 = smul.addr %s321, 8
        %s323 = scalar_lea.vmem [#allocation5], %s322
        %p324 = pneg %p216
        %p325 = pneg %p213
        %s326 = sand.u32 %s203, 1
        %s327 = scalar_lea.sflag [#allocation7], %s326
        %s328 = sand.u32 %s203, 1
        %s329 = smul.addr %s328, 32
        %s330 = scalar_lea.vmem [#allocation6], %s329
        %p331 = scmp.lt.s32.totalorder %s28, 1
        %s332 = scalar_select %p331, %s28, 1
        %s333 = smul.addr %s332, 8
        %s334 = scalar_lea.vmem %s0, %s333
        %p335 = scmp.lt.s32.totalorder %s28, 1
        %s336 = scalar_select %p335, %s28, 1
        %s337 = smul.addr %s336, 8
        %s338 = scalar_lea.vmem %s3, %s337
        %v339 = vld [vmem:[%s334] sm:$0xff]
        %v340 = vld [vmem:[%s1] sm:$0xff]
        %v341 = vld [vmem:[%s1 + $0x8] sm:$0xff]
        %v342 = vld [vmem:[%s1 + $0x10] sm:$0xff]
        %v343 = vld [vmem:[%s1 + $0x18] sm:$0xff]
        %v344 = vld [vmem:[%s1 + $0x20] sm:$0xff]
        %v345 = vld [vmem:[%s1 + $0x28] sm:$0xff]
        %v346 = vld [vmem:[%s1 + $0x30] sm:$0xff]
        %v347 = vld [vmem:[%s1 + $0x38] sm:$0xff]
        %vm348 = vcmask 261120
        %v350 = vsel %vm348, %v339, 0
        %352 = vmatprep.subr.mxu0 %v341
        %353 = vmatpush1.msra.mxu0 %v340
        %354 = vmatprep.subr.mxu0 %v343
        %355 = vmatpush1.msra.mxu0 %v342
        %356 = vmatprep.subr.mxu0 %v345
        %357 = vmatpush1.msra.mxu0 %v344
        %358 = vmatprep.subr.mxu0 %v347
        %359 = vmatpush1.msra.mxu0 %v346
        %360 = vmatprep.subr.mxu0 0.0
        %361 = vmatpush1.msra.mxu0 0.0
        %362 = vmatprep.subr.mxu0 0.0
        %363 = vmatpush1.msra.mxu0 0.0
        %364 = vmatprep.subr.mxu0 0.0
        %365 = vmatpush1.msra.mxu0 0.0
        %366 = vmatprep.subr.mxu0 0.0
        %367 = vmatpush1.msra.mxu0 0.0
        %368 = vmatprep.subr.mxu0 0.0
        %369 = vmatpush1.msra.mxu0 0.0
        %370 = vmatprep.subr.mxu0 0.0
        %371 = vmatpush1.msra.mxu0 0.0
        %372 = vmatprep.subr.mxu0 0.0
        %373 = vmatpush1.msra.mxu0 0.0
        %374 = vmatprep.subr.mxu0 0.0
        %375 = vmatpush1.msra.mxu0 0.0
        %376 = vmatprep.subr.mxu0 0.0
        %377 = vmatpush1.msra.mxu0 0.0
        %378 = vmatprep.subr.mxu0 0.0
        %379 = vmatpush1.msra.mxu0 0.0
        %380 = vmatprep.subr.mxu0 0.0
        %381 = vmatpush1.msra.mxu0 0.0
        %382 = vmatprep.subr.mxu0 0.0
        %383 = vmatpush1.msra.mxu0 0.0
        %384 = vmatprep.subr.mxu0 0.0
        %385 = vmatpush1.msra.mxu0 0.0
        %386 = vmatprep.subr.mxu0 0.0
        %387 = vmatpush1.msra.mxu0 0.0
        %388 = vmatprep.subr.mxu0 0.0
        %389 = vmatpush1.msra.mxu0 0.0
        %390 = vmatprep.subr.mxu0 0.0
        %391 = vmatpush1.msra.mxu0 0.0
        %392 = vmatprep.subr.mxu0 0.0
        %393 = vmatpush1.msra.mxu0 0.0
        %394 = vmatprep.subr.mxu0 0.0
        %395 = vmatpush1.msra.mxu0 0.0
        %396 = vmatprep.subr.mxu0 0.0
        %397 = vmatpush1.msra.mxu0 0.0
        %398 = vmatprep.subr.mxu0 0.0
        %399 = vmatpush1.msra.mxu0 0.0
        %400 = vmatprep.subr.mxu0 0.0
        %401 = vmatpush1.msra.mxu0 0.0
        %402 = vmatprep.subr.mxu0 0.0
        %403 = vmatpush1.msra.mxu0 0.0
        %404 = vmatprep.subr.mxu0 0.0
        %405 = vmatpush1.msra.mxu0 0.0
        %406 = vmatprep.subr.mxu0 0.0
        %407 = vmatpush1.msra.mxu0 0.0
        %408 = vmatprep.subr.mxu0 0.0
        %409 = vmatpush1.msra.mxu0 0.0
        %410 = vmatprep.subr.mxu0 0.0
        %411 = vmatpush1.msra.mxu0 0.0
        %412 = vmatprep.subr.mxu0 0.0
        %413 = vmatpush1.msra.mxu0 0.0
        %414 = vmatprep.subr.mxu0 0.0
        %415 = vmatpush1.msra.mxu0 0.0
        %416 = vmatprep.mubr.f32.mxu0 0.0
        %417 = vmatmul.mubr.f32.gmra.mrb[0].mxu0 %v350
        %v418 = vpop.f32.mrb[0].mxu0
        %v419 = vadd.f32 0.0, %v418
        %v420 = vpop.f32.mrb[0].mxu0
        %v421 = vadd.f32 0.0, %v420
        %422 = vdwg.mxu0
        %v423 = vld [vmem:[%s338] sm:$0xff]
        %v424 = vld [vmem:[%s287] sm:$0xff]
        %v425 = vmul.f32 %v419, %v423
        %v426 = vmul.f32 %v421, %v424
        %v427 = vadd.f32 %v425, %v426
        %429 = vrot.lane.b32.xlu0 %v423, 64
        %v430 = vpop.permute.xlu0 %429
        %v432 = vmul.f32 %v419, %v430
        %434 = vrot.lane.b32.xlu0 %v424, 64
        %v435 = vpop.permute.xlu0 %434
        %v437 = vmul.f32 %v421, %v435
        %v438 = vadd.f32 %v432, %v437
        %v439 = vld [vmem:[%s5] sm:$0xff]
        %441 = vrot.lane.b32.xlu0 %v438, 64
        %v442 = vpop.permute.xlu0 %441
        %vm443 = vcmask 130048
        %v445 = vsel %vm443, %v427, 0
        %v447 = vsel %vm443, %v442, 0
        %449 = vmatprep.subr.mxu0 0.0
        %450 = vmatpush1.xpose.msra.mxu0 %v447
        %451 = vmatprep.subr.mxu0 0.0
        %452 = vmatpush1.xpose.msra.mxu0 0.0
        %453 = vmatprep.subr.mxu0 0.0
        %454 = vmatpush1.xpose.msra.mxu0 0.0
        %455 = vmatprep.subr.mxu0 0.0
        %456 = vmatpush1.xpose.msra.mxu0 0.0
        %457 = vmatprep.subr.mxu0 0.0
        %458 = vmatpush1.xpose.msra.mxu0 0.0
        %459 = vmatprep.subr.mxu0 0.0
        %460 = vmatpush1.xpose.msra.mxu0 0.0
        %461 = vmatprep.subr.mxu0 0.0
        %462 = vmatpush1.xpose.msra.mxu0 0.0
        %463 = vmatprep.subr.mxu0 0.0
        %464 = vmatpush1.xpose.msra.mxu0 0.0
        %465 = vmatprep.subr.mxu0 0.0
        %466 = vmatpush1.xpose.msra.mxu0 0.0
        %467 = vmatprep.subr.mxu0 0.0
        %468 = vmatpush1.xpose.msra.mxu0 0.0
        %469 = vmatprep.subr.mxu0 0.0
        %470 = vmatpush1.xpose.msra.mxu0 0.0
        %471 = vmatprep.subr.mxu0 0.0
        %472 = vmatpush1.xpose.msra.mxu0 0.0
        %473 = vmatprep.subr.mxu0 0.0
        %474 = vmatpush1.xpose.msra.mxu0 0.0
        %475 = vmatprep.subr.mxu0 0.0
        %476 = vmatpush1.xpose.msra.mxu0 0.0
        %477 = vmatprep.subr.mxu0 0.0
        %478 = vmatpush1.xpose.msra.mxu0 0.0
        %479 = vmatprep.subr.mxu0 0.0
        %480 = vmatpush1.xpose.msra.mxu0 0.0
        %481 = vmatprep.subr.mxu0 0.0
        %482 = vmatpush1.xpose.msra.mxu0 0.0
        %483 = vmatprep.subr.mxu0 0.0
        %484 = vmatpush1.xpose.msra.mxu0 0.0
        %485 = vmatprep.subr.mxu0 0.0
        %486 = vmatpush1.xpose.msra.mxu0 0.0
        %487 = vmatprep.subr.mxu0 0.0
        %488 = vmatpush1.xpose.msra.mxu0 0.0
        %489 = vmatprep.subr.mxu0 0.0
        %490 = vmatpush1.xpose.msra.mxu0 0.0
        %491 = vmatprep.subr.mxu0 0.0
        %492 = vmatpush1.xpose.msra.mxu0 0.0
        %493 = vmatprep.subr.mxu0 0.0
        %494 = vmatpush1.xpose.msra.mxu0 0.0
        %495 = vmatprep.subr.mxu0 0.0
        %496 = vmatpush1.xpose.msra.mxu0 0.0
        %497 = vmatprep.subr.mxu0 0.0
        %498 = vmatpush1.xpose.msra.mxu0 0.0
        %499 = vmatprep.subr.mxu0 0.0
        %500 = vmatpush1.xpose.msra.mxu0 0.0
        %501 = vmatprep.subr.mxu0 0.0
        %502 = vmatpush1.xpose.msra.mxu0 0.0
        %503 = vmatprep.subr.mxu0 0.0
        %504 = vmatpush1.xpose.msra.mxu0 0.0
        %505 = vmatprep.subr.mxu0 0.0
        %506 = vmatpush1.xpose.msra.mxu0 0.0
        %507 = vmatprep.subr.mxu0 0.0
        %508 = vmatpush1.xpose.msra.mxu0 0.0
        %509 = vmatprep.subr.mxu0 0.0
        %510 = vmatpush1.xpose.msra.mxu0 0.0
        %511 = vmatprep.subr.mxu0 0.0
        %512 = vmatpush1.xpose.msra.mxu0 0.0
        %513 = vmatprep.mubr.f32.mxu0 0.0
        %514 = vmatmul.mubr.f32.gmra.mrb[0].mxu0 %v445
        %v515 = vpop.f32.mrb[0].mxu0
        %v516 = vadd.f32 0.0, %v515
        %v517 = vpop.f32.mrb[0].mxu0
        %518 = vdwg.mxu0
        %v519 = vmul.f32 %v516, 0.25
        %v520 = vadd.f32 %v519, %v439
        %vm521 = vcmask 64512
        %v522 = vsel %vm521, %v520, -inf
        %523 = vmax.xlane.f32.xlu0 %v522
        %v524 = vpop.xlane.xlu0 %523
        %v525 = vsub.f32 %v520, %v524
        %v526 = vmul.f32 %v525, 1.442695
        %v527 = vpow.pop %v526
        %v528 = vsel %vm521, %v527, 0.0
        %529 = vadd.xlane.f32.xlu0 %v528
        %v530 = vpop.xlane.xlu0 %529
        %v531 = vrcp.pop %v530
        %v532 = vmul.f32 %v527, %v531
        %533 = vst.msk [vmem:[%s330] sm:$0xff] %vm521, %v532
        %535 = vrot.lane.b32.xlu0 %v419, 32
        %v536 = vpop.permute.xlu0 %535
        %v539 = vsel %vm521, %v532, 0
        %541 = vmatprep.subr.mxu0 0.0
        %542 = vmatpush1.msra.mxu0 %v536
        %543 = vmatprep.subr.mxu0 0.0
        %544 = vmatpush1.msra.mxu0 0.0
        %545 = vmatprep.subr.mxu0 0.0
        %546 = vmatpush1.msra.mxu0 0.0
        %547 = vmatprep.subr.mxu0 0.0
        %548 = vmatpush1.msra.mxu0 0.0
        %549 = vmatprep.subr.mxu0 0.0
        %550 = vmatpush1.msra.mxu0 0.0
        %551 = vmatprep.subr.mxu0 0.0
        %552 = vmatpush1.msra.mxu0 0.0
        %553 = vmatprep.subr.mxu0 0.0
        %554 = vmatpush1.msra.mxu0 0.0
        %555 = vmatprep.subr.mxu0 0.0
        %556 = vmatpush1.msra.mxu0 0.0
        %557 = vmatprep.subr.mxu0 0.0
        %558 = vmatpush1.msra.mxu0 0.0
        %559 = vmatprep.subr.mxu0 0.0
        %560 = vmatpush1.msra.mxu0 0.0
        %561 = vmatprep.subr.mxu0 0.0
        %562 = vmatpush1.msra.mxu0 0.0
        %563 = vmatprep.subr.mxu0 0.0
        %564 = vmatpush1.msra.mxu0 0.0
        %565 = vmatprep.subr.mxu0 0.0
        %566 = vmatpush1.msra.mxu0 0.0
        %567 = vmatprep.subr.mxu0 0.0
        %568 = vmatpush1.msra.mxu0 0.0
        %569 = vmatprep.subr.mxu0 0.0
        %570 = vmatpush1.msra.mxu0 0.0
        %571 = vmatprep.subr.mxu0 0.0
        %572 = vmatpush1.msra.mxu0 0.0
        %573 = vmatprep.subr.mxu0 0.0
        %574 = vmatpush1.msra.mxu0 0.0
        %575 = vmatprep.subr.mxu0 0.0
        %576 = vmatpush1.msra.mxu0 0.0
        %577 = vmatprep.subr.mxu0 0.0
        %578 = vmatpush1.msra.mxu0 0.0
        %579 = vmatprep.subr.mxu0 0.0
        %580 = vmatpush1.msra.mxu0 0.0
        %581 = vmatprep.subr.mxu0 0.0
        %582 = vmatpush1.msra.mxu0 0.0
        %583 = vmatprep.subr.mxu0 0.0
        %584 = vmatpush1.msra.mxu0 0.0
        %585 = vmatprep.subr.mxu0 0.0
        %586 = vmatpush1.msra.mxu0 0.0
        %587 = vmatprep.subr.mxu0 0.0
        %588 = vmatpush1.msra.mxu0 0.0
        %589 = vmatprep.subr.mxu0 0.0
        %590 = vmatpush1.msra.mxu0 0.0
        %591 = vmatprep.subr.mxu0 0.0
        %592 = vmatpush1.msra.mxu0 0.0
        %593 = vmatprep.subr.mxu0 0.0
        %594 = vmatpush1.msra.mxu0 0.0
        %595 = vmatprep.subr.mxu0 0.0
        %596 = vmatpush1.msra.mxu0 0.0
        %597 = vmatprep.subr.mxu0 0.0
        %598 = vmatpush1.msra.mxu0 0.0
        %599 = vmatprep.subr.mxu0 0.0
        %600 = vmatpush1.msra.mxu0 0.0
        %601 = vmatprep.subr.mxu0 0.0
        %602 = vmatpush1.msra.mxu0 0.0
        %603 = vmatprep.subr.mxu0 0.0
        %604 = vmatpush1.msra.mxu0 0.0
        %605 = vmatprep.mubr.f32.mxu0 0.0
        %606 = vmatmul.mubr.f32.gmra.mrb[0].mxu0 %v539
        %v607 = vpop.f32.mrb[0].mxu0
        %v608 = vadd.f32 0.0, %v607
        %v609 = vpop.f32.mrb[0].mxu0
        %610 = vdwg.mxu0
        %611 = vrot.lane.b32.xlu0 %v427, 112
        %v612 = vpop.permute.xlu0 %611
        %v613 = vsel %vm443, %v612, 0
        %615 = vmatprep.subr.mxu0 0.0
        %616 = vmatpush1.xpose.msra.mxu0 %v447
        %617 = vmatprep.subr.mxu0 0.0
        %618 = vmatpush1.xpose.msra.mxu0 0.0
        %619 = vmatprep.subr.mxu0 0.0
        %620 = vmatpush1.xpose.msra.mxu0 0.0
        %621 = vmatprep.subr.mxu0 0.0
        %622 = vmatpush1.xpose.msra.mxu0 0.0
        %623 = vmatprep.subr.mxu0 0.0
        %624 = vmatpush1.xpose.msra.mxu0 0.0
        %625 = vmatprep.subr.mxu0 0.0
        %626 = vmatpush1.xpose.msra.mxu0 0.0
        %627 = vmatprep.subr.mxu0 0.0
        %628 = vmatpush1.xpose.msra.mxu0 0.0
        %629 = vmatprep.subr.mxu0 0.0
        %630 = vmatpush1.xpose.msra.mxu0 0.0
        %631 = vmatprep.subr.mxu0 0.0
        %632 = vmatpush1.xpose.msra.mxu0 0.0
        %633 = vmatprep.subr.mxu0 0.0
        %634 = vmatpush1.xpose.msra.mxu0 0.0
        %635 = vmatprep.subr.mxu0 0.0
        %636 = vmatpush1.xpose.msra.mxu0 0.0
        %637 = vmatprep.subr.mxu0 0.0
        %638 = vmatpush1.xpose.msra.mxu0 0.0
        %639 = vmatprep.subr.mxu0 0.0
        %640 = vmatpush1.xpose.msra.mxu0 0.0
        %641 = vmatprep.subr.mxu0 0.0
        %642 = vmatpush1.xpose.msra.mxu0 0.0
        %643 = vmatprep.subr.mxu0 0.0
        %644 = vmatpush1.xpose.msra.mxu0 0.0
        %645 = vmatprep.subr.mxu0 0.0
        %646 = vmatpush1.xpose.msra.mxu0 0.0
        %647 = vmatprep.subr.mxu0 0.0
        %648 = vmatpush1.xpose.msra.mxu0 0.0
        %649 = vmatprep.subr.mxu0 0.0
        %650 = vmatpush1.xpose.msra.mxu0 0.0
        %651 = vmatprep.subr.mxu0 0.0
        %652 = vmatpush1.xpose.msra.mxu0 0.0
        %653 = vmatprep.subr.mxu0 0.0
        %654 = vmatpush1.xpose.msra.mxu0 0.0
        %655 = vmatprep.subr.mxu0 0.0
        %656 = vmatpush1.xpose.msra.mxu0 0.0
        %657 = vmatprep.subr.mxu0 0.0
        %658 = vmatpush1.xpose.msra.mxu0 0.0
        %659 = vmatprep.subr.mxu0 0.0
        %660 = vmatpush1.xpose.msra.mxu0 0.0
        %661 = vmatprep.subr.mxu0 0.0
        %662 = vmatpush1.xpose.msra.mxu0 0.0
        %663 = vmatprep.subr.mxu0 0.0
        %664 = vmatpush1.xpose.msra.mxu0 0.0
        %665 = vmatprep.subr.mxu0 0.0
        %666 = vmatpush1.xpose.msra.mxu0 0.0
        %667 = vmatprep.subr.mxu0 0.0
        %668 = vmatpush1.xpose.msra.mxu0 0.0
        %669 = vmatprep.subr.mxu0 0.0
        %670 = vmatpush1.xpose.msra.mxu0 0.0
        %671 = vmatprep.subr.mxu0 0.0
        %672 = vmatpush1.xpose.msra.mxu0 0.0
        %673 = vmatprep.subr.mxu0 0.0
        %674 = vmatpush1.xpose.msra.mxu0 0.0
        %675 = vmatprep.subr.mxu0 0.0
        %676 = vmatpush1.xpose.msra.mxu0 0.0
        %677 = vmatprep.subr.mxu0 0.0
        %678 = vmatpush1.xpose.msra.mxu0 0.0
        %679 = vmatprep.mubr.f32.mxu0 0.0
        %680 = vmatmul.mubr.f32.gmra.mrb[0].mxu0 %v613
        %v681 = vpop.f32.mrb[0].mxu0
        %v682 = vadd.f32 0.0, %v681
        %v683 = vpop.f32.mrb[0].mxu0
        %684 = vdwg.mxu0
        %v685 = vmul.f32 %v682, 0.25
        %v686 = vadd.f32 %v685, %v439
        %v687 = vsel %vm521, %v686, -inf
        %688 = vmax.xlane.f32.xlu0 %v687
        %v689 = vpop.xlane.xlu0 %688
        %v690 = vsub.f32 %v686, %v689
        %v691 = vmul.f32 %v690, 1.442695
        %v692 = vpow.pop %v691
        %v693 = vsel %vm521, %v692, 0.0
        %694 = vadd.xlane.f32.xlu0 %v693
        %v695 = vpop.xlane.xlu0 %694
        %v696 = vrcp.pop %v695
        %v697 = vmul.f32 %v692, %v696
        %s698 = scalar_lea.vmem %s330, 8 [#allocation6]
        %699 = vst.msk [vmem:[%s698] sm:$0xff] %vm521, %v697
        %v701 = vsel %vm521, %v697, 0
        %703 = vmatprep.subr.mxu0 0.0
        %704 = vmatpush1.msra.mxu0 %v536
        %705 = vmatprep.subr.mxu0 0.0
        %706 = vmatpush1.msra.mxu0 0.0
        %707 = vmatprep.subr.mxu0 0.0
        %708 = vmatpush1.msra.mxu0 0.0
        %709 = vmatprep.subr.mxu0 0.0
        %710 = vmatpush1.msra.mxu0 0.0
        %711 = vmatprep.subr.mxu0 0.0
        %712 = vmatpush1.msra.mxu0 0.0
        %713 = vmatprep.subr.mxu0 0.0
        %714 = vmatpush1.msra.mxu0 0.0
        %715 = vmatprep.subr.mxu0 0.0
        %716 = vmatpush1.msra.mxu0 0.0
        %717 = vmatprep.subr.mxu0 0.0
        %718 = vmatpush1.msra.mxu0 0.0
        %719 = vmatprep.subr.mxu0 0.0
        %720 = vmatpush1.msra.mxu0 0.0
        %721 = vmatprep.subr.mxu0 0.0
        %722 = vmatpush1.msra.mxu0 0.0
        %723 = vmatprep.subr.mxu0 0.0
        %724 = vmatpush1.msra.mxu0 0.0
        %725 = vmatprep.subr.mxu0 0.0
        %726 = vmatpush1.msra.mxu0 0.0
        %727 = vmatprep.subr.mxu0 0.0
        %728 = vmatpush1.msra.mxu0 0.0
        %729 = vmatprep.subr.mxu0 0.0
        %730 = vmatpush1.msra.mxu0 0.0
        %731 = vmatprep.subr.mxu0 0.0
        %732 = vmatpush1.msra.mxu0 0.0
        %733 = vmatprep.subr.mxu0 0.0
        %734 = vmatpush1.msra.mxu0 0.0
        %735 = vmatprep.subr.mxu0 0.0
        %736 = vmatpush1.msra.mxu0 0.0
        %737 = vmatprep.subr.mxu0 0.0
        %738 = vmatpush1.msra.mxu0 0.0
        %739 = vmatprep.subr.mxu0 0.0
        %740 = vmatpush1.msra.mxu0 0.0
        %741 = vmatprep.subr.mxu0 0.0
        %742 = vmatpush1.msra.mxu0 0.0
        %743 = vmatprep.subr.mxu0 0.0
        %744 = vmatpush1.msra.mxu0 0.0
        %745 = vmatprep.subr.mxu0 0.0
        %746 = vmatpush1.msra.mxu0 0.0
        %747 = vmatprep.subr.mxu0 0.0
        %748 = vmatpush1.msra.mxu0 0.0
        %749 = vmatprep.subr.mxu0 0.0
        %750 = vmatpush1.msra.mxu0 0.0
        %751 = vmatprep.subr.mxu0 0.0
        %752 = vmatpush1.msra.mxu0 0.0
        %753 = vmatprep.subr.mxu0 0.0
        %754 = vmatpush1.msra.mxu0 0.0
        %755 = vmatprep.subr.mxu0 0.0
        %756 = vmatpush1.msra.mxu0 0.0
        %757 = vmatprep.subr.mxu0 0.0
        %758 = vmatpush1.msra.mxu0 0.0
        %759 = vmatprep.subr.mxu0 0.0
        %760 = vmatpush1.msra.mxu0 0.0
        %761 = vmatprep.subr.mxu0 0.0
        %762 = vmatpush1.msra.mxu0 0.0
        %763 = vmatprep.subr.mxu0 0.0
        %764 = vmatpush1.msra.mxu0 0.0
        %765 = vmatprep.subr.mxu0 0.0
        %766 = vmatpush1.msra.mxu0 0.0
        %767 = vmatprep.mubr.f32.mxu0 0.0
        %768 = vmatmul.mubr.f32.gmra.mrb[0].mxu0 %v701
        %v769 = vpop.f32.mrb[0].mxu0
        %v770 = vadd.f32 0.0, %v769
        %v771 = vpop.f32.mrb[0].mxu0
        %772 = vdwg.mxu0
        %773 = vrot.lane.b32.xlu0 %v427, 96
        %v774 = vpop.permute.xlu0 %773
        %775 = vrot.lane.b32.xlu0 %v438, 48
        %v776 = vpop.permute.xlu0 %775
        %v777 = vsel %vm443, %v774, 0
        %v779 = vsel %vm443, %v776, 0
        %781 = vmatprep.subr.mxu0 0.0
        %782 = vmatpush1.xpose.msra.mxu0 %v779
        %783 = vmatprep.subr.mxu0 0.0
        %784 = vmatpush1.xpose.msra.mxu0 0.0
        %785 = vmatprep.subr.mxu0 0.0
        %786 = vmatpush1.xpose.msra.mxu0 0.0
        %787 = vmatprep.subr.mxu0 0.0
        %788 = vmatpush1.xpose.msra.mxu0 0.0
        %789 = vmatprep.subr.mxu0 0.0
        %790 = vmatpush1.xpose.msra.mxu0 0.0
        %791 = vmatprep.subr.mxu0 0.0
        %792 = vmatpush1.xpose.msra.mxu0 0.0
        %793 = vmatprep.subr.mxu0 0.0
        %794 = vmatpush1.xpose.msra.mxu0 0.0
        %795 = vmatprep.subr.mxu0 0.0
        %796 = vmatpush1.xpose.msra.mxu0 0.0
        %797 = vmatprep.subr.mxu0 0.0
        %798 = vmatpush1.xpose.msra.mxu0 0.0
        %799 = vmatprep.subr.mxu0 0.0
        %800 = vmatpush1.xpose.msra.mxu0 0.0
        %801 = vmatprep.subr.mxu0 0.0
        %802 = vmatpush1.xpose.msra.mxu0 0.0
        %803 = vmatprep.subr.mxu0 0.0
        %804 = vmatpush1.xpose.msra.mxu0 0.0
        %805 = vmatprep.subr.mxu0 0.0
        %806 = vmatpush1.xpose.msra.mxu0 0.0
        %807 = vmatprep.subr.mxu0 0.0
        %808 = vmatpush1.xpose.msra.mxu0 0.0
        %809 = vmatprep.subr.mxu0 0.0
        %810 = vmatpush1.xpose.msra.mxu0 0.0
        %811 = vmatprep.subr.mxu0 0.0
        %812 = vmatpush1.xpose.msra.mxu0 0.0
        %813 = vmatprep.subr.mxu0 0.0
        %814 = vmatpush1.xpose.msra.mxu0 0.0
        %815 = vmatprep.subr.mxu0 0.0
        %816 = vmatpush1.xpose.msra.mxu0 0.0
        %817 = vmatprep.subr.mxu0 0.0
        %818 = vmatpush1.xpose.msra.mxu0 0.0
        %819 = vmatprep.subr.mxu0 0.0
        %820 = vmatpush1.xpose.msra.mxu0 0.0
        %821 = vmatprep.subr.mxu0 0.0
        %822 = vmatpush1.xpose.msra.mxu0 0.0
        %823 = vmatprep.subr.mxu0 0.0
        %824 = vmatpush1.xpose.msra.mxu0 0.0
        %825 = vmatprep.subr.mxu0 0.0
        %826 = vmatpush1.xpose.msra.mxu0 0.0
        %827 = vmatprep.subr.mxu0 0.0
        %828 = vmatpush1.xpose.msra.mxu0 0.0
        %829 = vmatprep.subr.mxu0 0.0
        %830 = vmatpush1.xpose.msra.mxu0 0.0
        %831 = vmatprep.subr.mxu0 0.0
        %832 = vmatpush1.xpose.msra.mxu0 0.0
        %833 = vmatprep.subr.mxu0 0.0
        %834 = vmatpush1.xpose.msra.mxu0 0.0
        %835 = vmatprep.subr.mxu0 0.0
        %836 = vmatpush1.xpose.msra.mxu0 0.0
        %837 = vmatprep.subr.mxu0 0.0
        %838 = vmatpush1.xpose.msra.mxu0 0.0
        %839 = vmatprep.subr.mxu0 0.0
        %840 = vmatpush1.xpose.msra.mxu0 0.0
        %841 = vmatprep.subr.mxu0 0.0
        %842 = vmatpush1.xpose.msra.mxu0 0.0
        %843 = vmatprep.subr.mxu0 0.0
        %844 = vmatpush1.xpose.msra.mxu0 0.0
        %845 = vmatprep.mubr.f32.mxu0 0.0
        %846 = vmatmul.mubr.f32.gmra.mrb[0].mxu0 %v777
        %v847 = vpop.f32.mrb[0].mxu0
        %v848 = vadd.f32 0.0, %v847
        %v849 = vpop.f32.mrb[0].mxu0
        %850 = vdwg.mxu0
        %v851 = vmul.f32 %v848, 0.25
        %v852 = vadd.f32 %v851, %v439
        %v853 = vsel %vm521, %v852, -inf
        %854 = vmax.xlane.f32.xlu0 %v853
        %v855 = vpop.xlane.xlu0 %854
        %v856 = vsub.f32 %v852, %v855
        %v857 = vmul.f32 %v856, 1.442695
        %v858 = vpow.pop %v857
        %v859 = vsel %vm521, %v858, 0.0
        %860 = vadd.xlane.f32.xlu0 %v859
        %v861 = vpop.xlane.xlu0 %860
        %v862 = vrcp.pop %v861
        %v863 = vmul.f32 %v858, %v862
        %s864 = scalar_lea.vmem %s330, 16 [#allocation6]
        %865 = vst.msk [vmem:[%s864] sm:$0xff] %vm521, %v863
        %866 = vrot.lane.b32.xlu0 %v419, 16
        %v867 = vpop.permute.xlu0 %866
        %v870 = vsel %vm521, %v863, 0
        %872 = vmatprep.subr.mxu0 0.0
        %873 = vmatpush1.msra.mxu0 %v867
        %874 = vmatprep.subr.mxu0 0.0
        %875 = vmatpush1.msra.mxu0 0.0
        %876 = vmatprep.subr.mxu0 0.0
        %877 = vmatpush1.msra.mxu0 0.0
        %878 = vmatprep.subr.mxu0 0.0
        %879 = vmatpush1.msra.mxu0 0.0
        %880 = vmatprep.subr.mxu0 0.0
        %881 = vmatpush1.msra.mxu0 0.0
        %882 = vmatprep.subr.mxu0 0.0
        %883 = vmatpush1.msra.mxu0 0.0
        %884 = vmatprep.subr.mxu0 0.0
        %885 = vmatpush1.msra.mxu0 0.0
        %886 = vmatprep.subr.mxu0 0.0
        %887 = vmatpush1.msra.mxu0 0.0
        %888 = vmatprep.subr.mxu0 0.0
        %889 = vmatpush1.msra.mxu0 0.0
        %890 = vmatprep.subr.mxu0 0.0
        %891 = vmatpush1.msra.mxu0 0.0
        %892 = vmatprep.subr.mxu0 0.0
        %893 = vmatpush1.msra.mxu0 0.0
        %894 = vmatprep.subr.mxu0 0.0
        %895 = vmatpush1.msra.mxu0 0.0
        %896 = vmatprep.subr.mxu0 0.0
        %897 = vmatpush1.msra.mxu0 0.0
        %898 = vmatprep.subr.mxu0 0.0
        %899 = vmatpush1.msra.mxu0 0.0
        %900 = vmatprep.subr.mxu0 0.0
        %901 = vmatpush1.msra.mxu0 0.0
        %902 = vmatprep.subr.mxu0 0.0
        %903 = vmatpush1.msra.mxu0 0.0
        %904 = vmatprep.subr.mxu0 0.0
        %905 = vmatpush1.msra.mxu0 0.0
        %906 = vmatprep.subr.mxu0 0.0
        %907 = vmatpush1.msra.mxu0 0.0
        %908 = vmatprep.subr.mxu0 0.0
        %909 = vmatpush1.msra.mxu0 0.0
        %910 = vmatprep.subr.mxu0 0.0
        %911 = vmatpush1.msra.mxu0 0.0
        %912 = vmatprep.subr.mxu0 0.0
        %913 = vmatpush1.msra.mxu0 0.0
        %914 = vmatprep.subr.mxu0 0.0
        %915 = vmatpush1.msra.mxu0 0.0
        %916 = vmatprep.subr.mxu0 0.0
        %917 = vmatpush1.msra.mxu0 0.0
        %918 = vmatprep.subr.mxu0 0.0
        %919 = vmatpush1.msra.mxu0 0.0
        %920 = vmatprep.subr.mxu0 0.0
        %921 = vmatpush1.msra.mxu0 0.0
        %922 = vmatprep.subr.mxu0 0.0
        %923 = vmatpush1.msra.mxu0 0.0
        %924 = vmatprep.subr.mxu0 0.0
        %925 = vmatpush1.msra.mxu0 0.0
        %926 = vmatprep.subr.mxu0 0.0
        %927 = vmatpush1.msra.mxu0 0.0
        %928 = vmatprep.subr.mxu0 0.0
        %929 = vmatpush1.msra.mxu0 0.0
        %930 = vmatprep.subr.mxu0 0.0
        %931 = vmatpush1.msra.mxu0 0.0
        %932 = vmatprep.subr.mxu0 0.0
        %933 = vmatpush1.msra.mxu0 0.0
        %934 = vmatprep.subr.mxu0 0.0
        %935 = vmatpush1.msra.mxu0 0.0
        %936 = vmatprep.mubr.f32.mxu0 0.0
        %937 = vmatmul.mubr.f32.gmra.mrb[0].mxu0 %v870
        %v938 = vpop.f32.mrb[0].mxu0
        %v939 = vadd.f32 0.0, %v938
        %v940 = vpop.f32.mrb[0].mxu0
        %941 = vdwg.mxu0
        %942 = vrot.lane.b32.xlu0 %v427, 80
        %v943 = vpop.permute.xlu0 %942
        %v944 = vsel %vm443, %v943, 0
        %946 = vmatprep.subr.mxu0 0.0
        %947 = vmatpush1.xpose.msra.mxu0 %v779
        %948 = vmatprep.subr.mxu0 0.0
        %949 = vmatpush1.xpose.msra.mxu0 0.0
        %950 = vmatprep.subr.mxu0 0.0
        %951 = vmatpush1.xpose.msra.mxu0 0.0
        %952 = vmatprep.subr.mxu0 0.0
        %953 = vmatpush1.xpose.msra.mxu0 0.0
        %954 = vmatprep.subr.mxu0 0.0
        %955 = vmatpush1.xpose.msra.mxu0 0.0
        %956 = vmatprep.subr.mxu0 0.0
        %957 = vmatpush1.xpose.msra.mxu0 0.0
        %958 = vmatprep.subr.mxu0 0.0
        %959 = vmatpush1.xpose.msra.mxu0 0.0
        %960 = vmatprep.subr.mxu0 0.0
        %961 = vmatpush1.xpose.msra.mxu0 0.0
        %962 = vmatprep.subr.mxu0 0.0
        %963 = vmatpush1.xpose.msra.mxu0 0.0
        %964 = vmatprep.subr.mxu0 0.0
        %965 = vmatpush1.xpose.msra.mxu0 0.0
        %966 = vmatprep.subr.mxu0 0.0
        %967 = vmatpush1.xpose.msra.mxu0 0.0
        %968 = vmatprep.subr.mxu0 0.0
        %969 = vmatpush1.xpose.msra.mxu0 0.0
        %970 = vmatprep.subr.mxu0 0.0
        %971 = vmatpush1.xpose.msra.mxu0 0.0
        %972 = vmatprep.subr.mxu0 0.0
        %973 = vmatpush1.xpose.msra.mxu0 0.0
        %974 = vmatprep.subr.mxu0 0.0
        %975 = vmatpush1.xpose.msra.mxu0 0.0
        %976 = vmatprep.subr.mxu0 0.0
        %977 = vmatpush1.xpose.msra.mxu0 0.0
        %978 = vmatprep.subr.mxu0 0.0
        %979 = vmatpush1.xpose.msra.mxu0 0.0
        %980 = vmatprep.subr.mxu0 0.0
        %981 = vmatpush1.xpose.msra.mxu0 0.0
        %982 = vmatprep.subr.mxu0 0.0
        %983 = vmatpush1.xpose.msra.mxu0 0.0
        %984 = vmatprep.subr.mxu0 0.0
        %985 = vmatpush1.xpose.msra.mxu0 0.0
        %986 = vmatprep.subr.mxu0 0.0
        %987 = vmatpush1.xpose.msra.mxu0 0.0
        %988 = vmatprep.subr.mxu0 0.0
        %989 = vmatpush1.xpose.msra.mxu0 0.0
        %990 = vmatprep.subr.mxu0 0.0
        %991 = vmatpush1.xpose.msra.mxu0 0.0
        %992 = vmatprep.subr.mxu0 0.0
        %993 = vmatpush1.xpose.msra.mxu0 0.0
        %994 = vmatprep.subr.mxu0 0.0
        %995 = vmatpush1.xpose.msra.mxu0 0.0
        %996 = vmatprep.subr.mxu0 0.0
        %997 = vmatpush1.xpose.msra.mxu0 0.0
        %998 = vmatprep.subr.mxu0 0.0
        %999 = vmatpush1.xpose.msra.mxu0 0.0
        %1000 = vmatprep.subr.mxu0 0.0
        %1001 = vmatpush1.xpose.msra.mxu0 0.0
        %1002 = vmatprep.subr.mxu0 0.0
        %1003 = vmatpush1.xpose.msra.mxu0 0.0
        %1004 = vmatprep.subr.mxu0 0.0
        %1005 = vmatpush1.xpose.msra.mxu0 0.0
        %1006 = vmatprep.subr.mxu0 0.0
        %1007 = vmatpush1.xpose.msra.mxu0 0.0
        %1008 = vmatprep.subr.mxu0 0.0
        %1009 = vmatpush1.xpose.msra.mxu0 0.0
        %1010 = vmatprep.mubr.f32.mxu0 0.0
        %1011 = vmatmul.mubr.f32.gmra.mrb[0].mxu0 %v944
        %v1012 = vpop.f32.mrb[0].mxu0
        %v1013 = vadd.f32 0.0, %v1012
        %v1014 = vpop.f32.mrb[0].mxu0
        %1015 = vdwg.mxu0
        %v1016 = vmul.f32 %v1013, 0.25
        %v1017 = vadd.f32 %v1016, %v439
        %v1018 = vsel %vm521, %v1017, -inf
        %1019 = vmax.xlane.f32.xlu0 %v1018
        %v1020 = vpop.xlane.xlu0 %1019
        %v1021 = vsub.f32 %v1017, %v1020
        %v1022 = vmul.f32 %v1021, 1.442695
        %v1023 = vpow.pop %v1022
        %v1024 = vsel %vm521, %v1023, 0.0
        %1025 = vadd.xlane.f32.xlu0 %v1024
        %v1026 = vpop.xlane.xlu0 %1025
        %v1027 = vrcp.pop %v1026
        %v1028 = vmul.f32 %v1023, %v1027
        %s1029 = scalar_lea.vmem %s330, 24 [#allocation6]
        %1030 = vst.msk [vmem:[%s1029] sm:$0xff] %vm521, %v1028
        %v1032 = vsel %vm521, %v1028, 0
        %1034 = vmatprep.subr.mxu0 0.0
        %1035 = vmatpush1.msra.mxu0 %v867
        %1036 = vmatprep.subr.mxu0 0.0
        %1037 = vmatpush1.msra.mxu0 0.0
        %1038 = vmatprep.subr.mxu0 0.0
        %1039 = vmatpush1.msra.mxu0 0.0
        %1040 = vmatprep.subr.mxu0 0.0
        %1041 = vmatpush1.msra.mxu0 0.0
        %1042 = vmatprep.subr.mxu0 0.0
        %1043 = vmatpush1.msra.mxu0 0.0
        %1044 = vmatprep.subr.mxu0 0.0
        %1045 = vmatpush1.msra.mxu0 0.0
        %1046 = vmatprep.subr.mxu0 0.0
        %1047 = vmatpush1.msra.mxu0 0.0
        %1048 = vmatprep.subr.mxu0 0.0
        %1049 = vmatpush1.msra.mxu0 0.0
        %1050 = vmatprep.subr.mxu0 0.0
        %1051 = vmatpush1.msra.mxu0 0.0
        %1052 = vmatprep.subr.mxu0 0.0
        %1053 = vmatpush1.msra.mxu0 0.0
        %1054 = vmatprep.subr.mxu0 0.0
        %1055 = vmatpush1.msra.mxu0 0.0
        %1056 = vmatprep.subr.mxu0 0.0
        %1057 = vmatpush1.msra.mxu0 0.0
        %1058 = vmatprep.subr.mxu0 0.0
        %1059 = vmatpush1.msra.mxu0 0.0
        %1060 = vmatprep.subr.mxu0 0.0
        %1061 = vmatpush1.msra.mxu0 0.0
        %1062 = vmatprep.subr.mxu0 0.0
        %1063 = vmatpush1.msra.mxu0 0.0
        %1064 = vmatprep.subr.mxu0 0.0
        %1065 = vmatpush1.msra.mxu0 0.0
        %1066 = vmatprep.subr.mxu0 0.0
        %1067 = vmatpush1.msra.mxu0 0.0
        %1068 = vmatprep.subr.mxu0 0.0
        %1069 = vmatpush1.msra.mxu0 0.0
        %1070 = vmatprep.subr.mxu0 0.0
        %1071 = vmatpush1.msra.mxu0 0.0
        %1072 = vmatprep.subr.mxu0 0.0
        %1073 = vmatpush1.msra.mxu0 0.0
        %1074 = vmatprep.subr.mxu0 0.0
        %1075 = vmatpush1.msra.mxu0 0.0
        %1076 = vmatprep.subr.mxu0 0.0
        %1077 = vmatpush1.msra.mxu0 0.0
        %1078 = vmatprep.subr.mxu0 0.0
        %1079 = vmatpush1.msra.mxu0 0.0
        %1080 = vmatprep.subr.mxu0 0.0
        %1081 = vmatpush1.msra.mxu0 0.0
        %1082 = vmatprep.subr.mxu0 0.0
        %1083 = vmatpush1.msra.mxu0 0.0
        %1084 = vmatprep.subr.mxu0 0.0
        %1085 = vmatpush1.msra.mxu0 0.0
        %1086 = vmatprep.subr.mxu0 0.0
        %1087 = vmatpush1.msra.mxu0 0.0
        %1088 = vmatprep.subr.mxu0 0.0
        %1089 = vmatpush1.msra.mxu0 0.0
        %1090 = vmatprep.subr.mxu0 0.0
        %1091 = vmatpush1.msra.mxu0 0.0
        %1092 = vmatprep.subr.mxu0 0.0
        %1093 = vmatpush1.msra.mxu0 0.0
        %1094 = vmatprep.subr.mxu0 0.0
        %1095 = vmatpush1.msra.mxu0 0.0
        %1096 = vmatprep.subr.mxu0 0.0
        %1097 = vmatpush1.msra.mxu0 0.0
        %1098 = vmatprep.mubr.f32.mxu0 0.0
        %1099 = vmatmul.mubr.f32.gmra.mrb[0].mxu0 %v1032
        %v1100 = vpop.f32.mrb[0].mxu0
        %v1101 = vadd.f32 0.0, %v1100
        %v1102 = vpop.f32.mrb[0].mxu0
        %1103 = vdwg.mxu0
        %1105 = vrot.lane.b32.xlu0 %v770, 16
        %v1106 = vpop.permute.xlu0 %1105
        %1109 = vrot.lane.b32.xlu0 %v939, 32
        %v1110 = vpop.permute.xlu0 %1109
        %1113 = vrot.lane.b32.xlu0 %v1101, 48
        %v1114 = vpop.permute.xlu0 %1113
        %v1116 = vsel %vm443, %v608, %v1106
        %v1117 = vsel %vm348, %v1116, %v1110
        %vm1118 = vcmask 392192
        %v1119 = vsel %vm1118, %v1117, %v1114
        %v1120 = vld [vmem:[%s2] sm:$0xff]
        %v1121 = vld [vmem:[%s2 + $0x8] sm:$0xff]
        %v1122 = vld [vmem:[%s2 + $0x10] sm:$0xff]
        %v1123 = vld [vmem:[%s2 + $0x18] sm:$0xff]
        %v1124 = vld [vmem:[%s2 + $0x20] sm:$0xff]
        %v1125 = vld [vmem:[%s2 + $0x28] sm:$0xff]
        %v1126 = vld [vmem:[%s2 + $0x30] sm:$0xff]
        %v1127 = vld [vmem:[%s2 + $0x38] sm:$0xff]
        %vm1128 = vcmask 523264
        %v1130 = vsel %vm1128, %v1119, 0
        %1132 = vmatprep.subr.mxu0 0.0
        %1133 = vmatpush1.msra.mxu0 %v1120
        %1134 = vmatprep.subr.mxu0 0.0
        %1135 = vmatpush1.msra.mxu0 %v1121
        %1136 = vmatprep.subr.mxu0 0.0
        %1137 = vmatpush1.msra.mxu0 %v1122
        %1138 = vmatprep.subr.mxu0 0.0
        %1139 = vmatpush1.msra.mxu0 %v1123
        %1140 = vmatprep.subr.mxu0 0.0
        %1141 = vmatpush1.msra.mxu0 %v1124
        %1142 = vmatprep.subr.mxu0 0.0
        %1143 = vmatpush1.msra.mxu0 %v1125
        %1144 = vmatprep.subr.mxu0 0.0
        %1145 = vmatpush1.msra.mxu0 %v1126
        %1146 = vmatprep.subr.mxu0 0.0
        %1147 = vmatpush1.msra.mxu0 %v1127
        %1148 = vmatprep.subr.mxu0 0.0
        %1149 = vmatpush1.msra.mxu0 0.0
        %1150 = vmatprep.subr.mxu0 0.0
        %1151 = vmatpush1.msra.mxu0 0.0
        %1152 = vmatprep.subr.mxu0 0.0
        %1153 = vmatpush1.msra.mxu0 0.0
        %1154 = vmatprep.subr.mxu0 0.0
        %1155 = vmatpush1.msra.mxu0 0.0
        %1156 = vmatprep.subr.mxu0 0.0
        %1157 = vmatpush1.msra.mxu0 0.0
        %1158 = vmatprep.subr.mxu0 0.0
        %1159 = vmatpush1.msra.mxu0 0.0
        %1160 = vmatprep.subr.mxu0 0.0
        %1161 = vmatpush1.msra.mxu0 0.0
        %1162 = vmatprep.subr.mxu0 0.0
        %1163 = vmatpush1.msra.mxu0 0.0
        %1164 = vmatprep.subr.mxu0 0.0
        %1165 = vmatpush1.msra.mxu0 0.0
        %1166 = vmatprep.subr.mxu0 0.0
        %1167 = vmatpush1.msra.mxu0 0.0
        %1168 = vmatprep.subr.mxu0 0.0
        %1169 = vmatpush1.msra.mxu0 0.0
        %1170 = vmatprep.subr.mxu0 0.0
        %1171 = vmatpush1.msra.mxu0 0.0
        %1172 = vmatprep.subr.mxu0 0.0
        %1173 = vmatpush1.msra.mxu0 0.0
        %1174 = vmatprep.subr.mxu0 0.0
        %1175 = vmatpush1.msra.mxu0 0.0
        %1176 = vmatprep.subr.mxu0 0.0
        %1177 = vmatpush1.msra.mxu0 0.0
        %1178 = vmatprep.subr.mxu0 0.0
        %1179 = vmatpush1.msra.mxu0 0.0
        %1180 = vmatprep.subr.mxu0 0.0
        %1181 = vmatpush1.msra.mxu0 0.0
        %1182 = vmatprep.subr.mxu0 0.0
        %1183 = vmatpush1.msra.mxu0 0.0
        %1184 = vmatprep.subr.mxu0 0.0
        %1185 = vmatpush1.msra.mxu0 0.0
        %1186 = vmatprep.subr.mxu0 0.0
        %1187 = vmatpush1.msra.mxu0 0.0
        %1188 = vmatprep.subr.mxu0 0.0
        %1189 = vmatpush1.msra.mxu0 0.0
        %1190 = vmatprep.subr.mxu0 0.0
        %1191 = vmatpush1.msra.mxu0 0.0
        %1192 = vmatprep.subr.mxu0 0.0
        %1193 = vmatpush1.msra.mxu0 0.0
        %1194 = vmatprep.subr.mxu0 0.0
        %1195 = vmatpush1.msra.mxu0 0.0
        %1196 = vmatprep.mubr.f32.mxu0 0.0
        %1197 = vmatmul.mubr.f32.gmra.mrb[0].mxu0 %v1130
        %v1198 = vpop.f32.mrb[0].mxu0
        %v1199 = vadd.f32 0.0, %v1198
        %v1200 = vpop.f32.mrb[0].mxu0
        %1201 = vdwg.mxu0
        %1202 = vst.msk [vmem:[%s323] sm:$0xff] %vm348, %v1199
        %s1203 = sand.u32 %s177, 1
        %s1204 = scalar_lea.sflag [#allocation4], %s1203
        %s1205 = sand.u32 %s177, 1
        %s1206 = smul.addr %s1205, 8
        %s1207 = scalar_lea.vmem [#allocation5], %s1206
        %s1208 = sand.u32 %s203, 1
        %s1209 = scalar_lea.sflag [#allocation7], %s1208
        %s1210 = sand.u32 %s203, 1
        %s1211 = smul.addr %s1210, 32
        %s1212 = scalar_lea.vmem [#allocation6], %s1211
        // Predicated region
        $region49: #{tpu_custom_call.1} parent=43 // pred_check
          %p1213 = pneg %p187
        $region50: #{tpu_custom_call.1} parent=43 // pred_check_branch
          %1215 = sbr.rel (%p1213) target = $region52
        $region51: #{tpu_custom_call.1} parent=43 // pred_region
          %s1217 = ssub.s32 128, 128
          %1218 = vsyncadd %s1204, %s1217
          %s1219 = smul.addr %s28, 128
          %s1220 = scalar_lea.hbm %s6, %s1219
          %s1222 = sshll.u32 %s1207, 4
          %s1223 = int_to_ptr.vmem [resolvable:$true] %s1222
          %1225 = dma.vmem_to_hbm [thread:$0]  %s1223, 128, %s1220, %s1204
        $region52: #{tpu_custom_call.1} parent=43 // pred_fallthru
          _
        // Predicated region
        $region53: #{tpu_custom_call.1} parent=43 // pred_check
          %p1226 = pneg %p213
        $region54: #{tpu_custom_call.1} parent=43 // pred_check_branch
          %1228 = sbr.rel (%p1226) target = $region56
        $region55: #{tpu_custom_call.1} parent=43 // pred_region
          %s1230 = ssub.s32 512, 512
          %1231 = vsyncadd %s1209, %s1230
          %s1232 = smul.addr %s28, 4
          %s1233 = smul.addr %s1232, 128
          %s1234 = scalar_lea.hbm %s7, %s1233
          %s1235 = sshll.u32 %s1212, 4
          %s1236 = int_to_ptr.vmem [resolvable:$true] %s1235
          %1241 = dma.vmem_to_hbm [thread:$0]  %s1236, 512, %s1234, %s1209, 128, 128, 8
        $region56: #{tpu_custom_call.1} parent=43 // pred_fallthru
          _
      $region44: #{tpu_custom_call.1} parent=5 // pred_fallthru
        _
      %p1242 = scmp.le.s32.totalorder 2, %s23
      // Predicated region
      $region57: #{tpu_custom_call.1} parent=5 // pred_check
        %p1243 = pneg %p1242
      $region58: #{tpu_custom_call.1} parent=5 // pred_check_branch
        %1245 = sbr.rel (%p1243) target = $region60
      $region59: #{tpu_custom_call.1} parent=5 // pred_region
        %s1246 = ssub.s32 %s23, 2
        // Predicated region
        $region61: #{tpu_custom_call.1} parent=59 // pred_check
          %p1247 = pneg %p193
        $region62: #{tpu_custom_call.1} parent=59 // pred_check_branch
          %1249 = sbr.rel (%p1247) target = $region64
        $region63: #{tpu_custom_call.1} parent=59 // pred_region
          %s1250 = sand.u32 %s178, 1
          %s1251 = scalar_lea.sflag [#allocation4], %s1250
          %s1252 = sand.u32 %s178, 1
          %s1253 = smul.addr %s1252, 8
          %s1254 = scalar_lea.vmem [#allocation5], %s1253
          %1255 = dma.done %s1251, 128
        $region64: #{tpu_custom_call.1} parent=59 // pred_fallthru
          _
        // Predicated region
        $region65: #{tpu_custom_call.1} parent=59 // pred_check
          %p1256 = pneg %p219
        $region66: #{tpu_custom_call.1} parent=59 // pred_check_branch
          %1258 = sbr.rel (%p1256) target = $region68
        $region67: #{tpu_custom_call.1} parent=59 // pred_region
          %s1259 = sand.u32 %s204, 1
          %s1260 = scalar_lea.sflag [#allocation7], %s1259
          %s1261 = sand.u32 %s204, 1
          %s1262 = smul.addr %s1261, 32
          %s1263 = scalar_lea.vmem [#allocation6], %s1262
          %1264 = dma.done %s1260, 512
        $region68: #{tpu_custom_call.1} parent=59 // pred_fallthru
          _
      $region60: #{tpu_custom_call.1} parent=5 // pred_fallthru
        _
    $region6: #{tpu_custom_call.1} parent=1 // loop_footer
      %s27 = sadd.s32 1, %s23
    $region7: #{tpu_custom_call.1} parent=1 // loop_footer_branch
      %22 = sbr.rel target = $region3
    $region8: #{tpu_custom_call.1} parent=1 // loop_exit
      _
    %1265 = vsyncpa [#allocation3], 1
    %s1266 = scalar_lea.sflag [#allocation3], 1
    %1267 = vsyncpa %s1266, 1
    %1268 = vsyncpa [#allocation4], 1
    %s1269 = scalar_lea.sflag [#allocation4], 1
    %1270 = vsyncpa %s1269, 1
    %1271 = vsyncpa [#allocation7], 1
    %s1272 = scalar_lea.sflag [#allocation7], 1
    %1273 = vsyncpa %s1272, 1

</llo_original>
